<compile_context>
chip_gen: v5e
topology: v5e:2x2
jax: 0.10.0
libtpu: 0.0.40
codegen_flags: <defaults>
</compile_context>

<pallas_src>
import functools
import numpy as np
import jax
import jax.numpy as jnp
from jax import lax
from jax.experimental import pallas as pl
from jax.experimental.pallas import tpu as pltpu

NUM_ROTATIONS = 16
BN_EPS = 1e-5


# ----------------------------------------------------------------------------
# Pallas kernel: fused pushnet head (BN folded) -> ReLU -> matmul -> ReLU -> matmul
# ----------------------------------------------------------------------------
def pushnet_head_kernel(x_ref, b0_ref, w0_ref, b1_ref, w1t_ref, o_ref):
    # x_ref: (TP, 2048) bf16 pixels x channels
    x = x_ref[...].astype(jnp.float32)
    # folded BN0 (scale folded into w0) + ReLU, in f32 (v5e VPU has no bf16)
    x = jnp.maximum(x + b0_ref[...], 0.0)
    # Conv2d(2048->64, 1x1, no bias): bf16 MXU matmul, f32 accumulation
    h = jnp.dot(x.astype(jnp.bfloat16), w0_ref[...],
                preferred_element_type=jnp.float32)          # (TP, 64)
    # folded BN1 + ReLU
    h = jnp.maximum(h + b1_ref[...], 0.0)
    # Conv2d(64->1, 1x1, no bias), computed LANE-DENSE:
    #   out[1, TP] = w1t (1,64) . h^T  (contract the 64-channel dim)
    o_ref[...] = lax.dot_general(
        w1t_ref[...], h,
        dimension_numbers=(((1,), (1,)), ((), ())),
        preferred_element_type=jnp.float32)                  # (1, TP)


def _round_up(a, b):
    return (a + b - 1) // b * b


def pushnet_head(feat_nhwc, head):
    """feat_nhwc: (B, Hf, Wf, 2048) channels-last -> (B, Hf, Wf, 1)."""
    B, Hf, Wf, C = feat_nhwc.shape
    P = B * Hf * Wf
    x = feat_nhwc.reshape(P, C).astype(jnp.bfloat16)   # free reshape (NHWC)

    # pad pixel rows to a multiple of 128 so the output is lane-dense,
    # then pick the largest tile in {512, 256, 128} that divides it.
    P_pad = _round_up(P, 128)
    if P_pad % 512 == 0:
        TP = 512
    elif P_pad % 256 == 0:
        TP = 256
    else:
        TP = 128
    if P_pad != P:
        x = jnp.pad(x, ((0, P_pad - P), (0, 0)))
    grid = (P_pad // TP,)

    out = pl.pallas_call(
        pushnet_head_kernel,
        out_shape=jax.ShapeDtypeStruct((1, P_pad), jnp.float32),
        grid=grid,
        in_specs=[
            pl.BlockSpec((TP, C), lambda i: (i, 0)),    # x tile (bf16)
            pl.BlockSpec((1, C), lambda i: (0, 0)),     # folded BN0 bias (f32)
            pl.BlockSpec((C, 64), lambda i: (0, 0)),    # folded conv0 weight (bf16)
            pl.BlockSpec((1, 64), lambda i: (0, 0)),    # folded BN1 bias (f32)
            pl.BlockSpec((1, 64), lambda i: (0, 0)),    # folded conv1 weight^T (f32)
        ],
        out_specs=pl.BlockSpec((1, TP), lambda i: (0, i)),   # lane-dense output row
        compiler_params=pltpu.CompilerParams(
            dimension_semantics=("parallel",)),
    )(x, head["b0"], head["w0"], head["b1"], head["w1t"])

    return out.reshape(P_pad)[:P].reshape(B, Hf, Wf, 1)


# ----------------------------------------------------------------------------
# JAX glue: affine_grid + grid_sample(nearest), trunk stub, bilinear upsample
# ----------------------------------------------------------------------------
def affine_grid_sample_nearest(x, theta):
    """PyTorch F.affine_grid + F.grid_sample(mode='nearest', padding='zeros',
    align_corners=False) with one 2x3 theta applied to every batch item."""
    N, C, H, W = x.shape
    ys = 2.0 * (jnp.arange(H, dtype=jnp.float32) + 0.5) / H - 1.0
    xs = 2.0 * (jnp.arange(W, dtype=jnp.float32) + 0.5) / W - 1.0
    gy, gx = jnp.meshgrid(ys, xs, indexing="ij")              # (H, W)
    src_x = theta[0, 0] * gx + theta[0, 1] * gy + theta[0, 2]
    src_y = theta[1, 0] * gx + theta[1, 1] * gy + theta[1, 2]
    ix = ((src_x + 1.0) * W - 1.0) * 0.5                      # align_corners=False
    iy = ((src_y + 1.0) * H - 1.0) * 0.5
    ix_n = jnp.round(ix).astype(jnp.int32)
    iy_n = jnp.round(iy).astype(jnp.int32)
    valid = (ix_n >= 0) & (ix_n < W) & (iy_n >= 0) & (iy_n < H)
    ix_c = jnp.clip(ix_n, 0, W - 1)
    iy_c = jnp.clip(iy_n, 0, H - 1)
    sampled = x[:, :, iy_c, ix_c]                             # (N, C, H, W)
    return jnp.where(valid[None, None, :, :], sampled, 0.0)


def trunk_stub(x, proj_w):
    """Deterministic stand-in for densenet121.features:
    (N, 3, H, W) NCHW -> (N, H/32, W/32, 1024) channels-last."""
    N, C, H, W = x.shape
    pooled = x.reshape(N, C, H // 32, 32, W // 32, 32).mean(axis=(3, 5))  # (N,C,Hf,Wf)
    feat = jnp.einsum("nchw,co->nhwo", pooled, proj_w)                    # NHWC
    return jax.nn.relu(feat)


def bilinear_upsample_x16(x):
    """nn.Upsample(scale_factor=16, mode='bilinear'), align_corners=False."""
    N, C, H, W = x.shape
    return jax.image.resize(x, (N, C, 16 * H, 16 * W), method="bilinear")


# ----------------------------------------------------------------------------
# Parameters (mirrors push_net.__init__ init scheme) with BN folding
# ----------------------------------------------------------------------------
def init_params(key):
    k0, k1, k2, k3 = jax.random.split(key, 4)
    # conv weights: kaiming_normal_ (fan_in, relu gain)
    w0_raw = jax.random.normal(k0, (2048, 64), jnp.float32) * np.sqrt(2.0 / 2048.0)
    w1_raw = jax.random.normal(k1, (64, 1), jnp.float32) * np.sqrt(2.0 / 64.0)
    # eval-mode BatchNorm: weight=1, bias=0, running_mean=0, running_var=1
    s0 = jnp.full((2048,), 1.0, jnp.float32) / jnp.sqrt(1.0 + BN_EPS)
    t0 = jnp.zeros((2048,), jnp.float32)
    s1 = jnp.full((64,), 1.0, jnp.float32) / jnp.sqrt(1.0 + BN_EPS)
    t1 = jnp.zeros((64,), jnp.float32)
    # Fold BN scales into the conv weights (valid: s0, s1 > 0):
    #   ReLU(s*x + t) = s * ReLU(x + t/s);  dot(s*a, W) = dot(a, diag(s) @ W)
    head = dict(
        w0=(w0_raw * s0[:, None]).astype(jnp.bfloat16),          # (2048, 64)
        b0=(t0 / s0).reshape(1, 2048).astype(jnp.float32),       # (1, 2048)
        w1t=(w1_raw * s1[:, None]).T.astype(jnp.float32),        # (1, 64)
        b1=(t1 / s1).reshape(1, 64).astype(jnp.float32),         # (1, 64)
    )
    # deterministic 3 -> 1024 trunk-stub projections
    color_proj = jax.random.normal(k2, (3, 1024), jnp.float32) * 0.1
    depth_proj = jax.random.normal(k3, (3, 1024), jnp.float32) * 0.1
    return dict(head=head, color_proj=color_proj, depth_proj=depth_proj)


# ----------------------------------------------------------------------------
# Forward pass (mirrors push_net.forward); rotations are batched through ONE
# pallas_call in the is_volatile path.
# ----------------------------------------------------------------------------
def _rotation_thetas(rot_indices):
    before, after = [], []
    for r in rot_indices:
        t = np.radians(r * (360.0 / NUM_ROTATIONS))
        before.append([[np.cos(-t), np.sin(-t), 0.0],
                       [-np.sin(-t), np.cos(-t), 0.0]])
        after.append([[np.cos(t), np.sin(t), 0.0],
                      [-np.sin(t), np.cos(t), 0.0]])
    return (jnp.asarray(before, jnp.float32), jnp.asarray(after, jnp.float32))


def _forward_rotations(color, depth, params, rot_indices):
    R = len(rot_indices)
    N = color.shape[0]
    th_b, th_a = _rotation_thetas(rot_indices)

    # rotate inputs for every requested rotation
    rot_c = jax.vmap(lambda th: affine_grid_sample_nearest(color, th))(th_b)
    rot_d = jax.vmap(lambda th: affine_grid_sample_nearest(depth, th))(th_b)
    rot_c = rot_c.reshape((R * N,) + color.shape[1:])
    rot_d = rot_d.reshape((R * N,) + depth.shape[1:])

    # trunks (stubbed) -> channels-last features, concat on channel axis
    feat_c = trunk_stub(rot_c, params["color_proj"])          # (R*N, Hf, Wf, 1024)
    feat_d = trunk_stub(rot_d, params["depth_proj"])
    feat = jnp.concatenate([feat_c, feat_d], axis=-1)         # (R*N, Hf, Wf, 2048)
    Hf, Wf = feat.shape[1], feat.shape[2]

    # fused pushnet head: ONE pallas_call over all rotations' pixels
    head_out = pushnet_head(feat, params["head"])             # (R*N, Hf, Wf, 1)
    head_out = head_out.reshape(R, N, Hf, Wf, 1).transpose(0, 1, 4, 2, 3)  # (R,N,1,Hf,Wf)

    # per-rotation rotate-back + x16 bilinear upsample (tiny tensors)
    head_rot = jax.vmap(affine_grid_sample_nearest)(head_out, th_a)
    up = jax.vmap(bilinear_upsample_x16)(head_rot)            # (R, N, 1, 16Hf, 16Wf)

    # interm feature of the LAST rotation, NCHW (matches PyTorch return value)
    last_feat = feat[(R - 1) * N: R * N]                      # (N, Hf, Wf, 2048)
    interm_nchw = jnp.transpose(last_feat, (0, 3, 1, 2))      # (N, 2048, Hf, Wf)
    return up, interm_nchw


def push_net_forward(color, depth, params, is_volatile=False, specific_rotation=-1):
    if is_volatile:
        up, interm = _forward_rotations(color, depth, params,
                                        list(range(NUM_ROTATIONS)))
        push_output_prob = [[up[r]] for r in range(NUM_ROTATIONS)]
        return push_output_prob, interm
    else:
        up, interm = _forward_rotations(color, depth, params, [specific_rotation])
        return [[up[0]]], interm


# ----------------------------------------------------------------------------
if __name__ == "__main__":
    key = jax.random.PRNGKey(0)
    kp, kc, kd = jax.random.split(key, 3)
    params = init_params(kp)

    # small NCHW inputs (batch=2, 3 channels, 64x64 -> trunk features 2x2x1024 each)
    color = jax.random.uniform(kc, (2, 3, 64, 64), jnp.float32)
    depth = jax.random.uniform(kd, (2, 3, 64, 64), jnp.float32)

    # volatile path: all 16 rotations batched through one pallas_call (P = 128)
    fwd_vol = jax.jit(functools.partial(push_net_forward, is_volatile=True))
    probs, interm = fwd_vol(color, depth, params)
    out0 = probs[0][0]
    jax.block_until_ready(out0)
    jax.block_until_ready(interm)
    assert len(probs) == NUM_ROTATIONS
    assert out0.shape == (2, 1, 32, 32), out0.shape
    assert interm.shape == (2, 2048, 2, 2), interm.shape

    # specific-rotation path
    fwd_one = jax.jit(functools.partial(push_net_forward, is_volatile=False,
                                        specific_rotation=3))
    probs1, interm1 = fwd_one(color, depth, params)
    out1 = probs1[0][0]
    jax.block_until_ready(out1)
    jax.block_until_ready(interm1)
    assert out1.shape == (2, 1, 32, 32), out1.shape
    assert interm1.shape == (2, 2048, 2, 2), interm1.shape

    print("KERNEL_OK")
</pallas_src>

<mosaic_0001>
module attributes {stable_mosaic.version = 11 : i64} {
  func.func @pushnet_head_kernel(%arg0: i32, %arg1: memref<128x2048xbf16, #tpu.memory_space<vmem>>, %arg2: memref<1x2048xf32, #tpu.memory_space<vmem>>, %arg3: memref<2048x64xbf16, #tpu.memory_space<vmem>>, %arg4: memref<1x64xf32, #tpu.memory_space<vmem>>, %arg5: memref<1x64xf32, #tpu.memory_space<vmem>>, %arg6: memref<1x128xf32, #tpu.memory_space<vmem>>) attributes {dimension_semantics = [#tpu.dimension_semantics<parallel>], iteration_bounds = array<i64: 1>, scalar_prefetch = 0 : i64, scratch_operands = 0 : i64, tpu.core_type = #tpu.core_type<tc>, window_params = [{transform_indices = @transform_0, window_bounds = array<i64: 128, 2048>}, {pipeline_mode = #tpu.pipeline_mode<synchronous>, transform_indices = @transform_1, window_bounds = array<i64: 1, 2048>}, {pipeline_mode = #tpu.pipeline_mode<synchronous>, transform_indices = @transform_2, window_bounds = array<i64: 2048, 64>}, {pipeline_mode = #tpu.pipeline_mode<synchronous>, transform_indices = @transform_3, window_bounds = array<i64: 1, 64>}, {pipeline_mode = #tpu.pipeline_mode<synchronous>, transform_indices = @transform_4, window_bounds = array<i64: 1, 64>}, {transform_indices = @transform_5, window_bounds = array<i64: 1, 128>}]} {
    %c0 = arith.constant 0 : index
    %c0_0 = arith.constant 0 : index
    %0 = vector.load %arg1[%c0, %c0_0] : memref<128x2048xbf16, #tpu.memory_space<vmem>>, vector<128x2048xbf16>
    %1 = arith.extf %0 : vector<128x2048xbf16> to vector<128x2048xf32>
    %c0_1 = arith.constant 0 : index
    %c0_2 = arith.constant 0 : index
    %2 = vector.load %arg2[%c0_1, %c0_2] : memref<1x2048xf32, #tpu.memory_space<vmem>>, vector<1x2048xf32>
    %3 = vector.broadcast %2 : vector<1x2048xf32> to vector<128x2048xf32>
    %4 = arith.addf %1, %3 : vector<128x2048xf32>
    %cst = arith.constant 0.000000e+00 : f32
    %5 = vector.broadcast %cst : f32 to vector<128x2048xf32>
    %6 = arith.maximumf %4, %5 : vector<128x2048xf32>
    %7 = arith.truncf %6 : vector<128x2048xf32> to vector<128x2048xbf16>
    %c0_3 = arith.constant 0 : index
    %c0_4 = arith.constant 0 : index
    %8 = vector.load %arg3[%c0_3, %c0_4] : memref<2048x64xbf16, #tpu.memory_space<vmem>>, vector<2048x64xbf16>
    %cst_5 = arith.constant dense<0.000000e+00> : vector<128x64xf32>
    %9 = tpu.matmul %7, %8, %cst_5 {dimension_numbers = #tpu.dot_dimension_numbers<[1], [0], [0], [1], [0, 0, 1, 1], [], []>} : vector<128x2048xbf16>, vector<2048x64xbf16>, vector<128x64xf32> -> vector<128x64xf32>
    %c0_6 = arith.constant 0 : index
    %c0_7 = arith.constant 0 : index
    %10 = vector.load %arg4[%c0_6, %c0_7] : memref<1x64xf32, #tpu.memory_space<vmem>>, vector<1x64xf32>
    %11 = vector.broadcast %10 : vector<1x64xf32> to vector<128x64xf32>
    %12 = arith.addf %9, %11 : vector<128x64xf32>
    %cst_8 = arith.constant 0.000000e+00 : f32
    %13 = vector.broadcast %cst_8 : f32 to vector<128x64xf32>
    %14 = arith.maximumf %12, %13 : vector<128x64xf32>
    %c0_9 = arith.constant 0 : index
    %c0_10 = arith.constant 0 : index
    %15 = vector.load %arg5[%c0_9, %c0_10] : memref<1x64xf32, #tpu.memory_space<vmem>>, vector<1x64xf32>
    %cst_11 = arith.constant dense<0.000000e+00> : vector<1x128xf32>
    %16 = tpu.matmul %15, %14, %cst_11 {dimension_numbers = #tpu.dot_dimension_numbers<[1], [1], [0], [0], [0, 0, 1, 0], [], []>} : vector<1x64xf32>, vector<128x64xf32>, vector<1x128xf32> -> vector<1x128xf32>
    %c0_12 = arith.constant 0 : index
    %c0_13 = arith.constant 0 : index
    %17 = vector.load %arg6[%c0_12, %c0_13] : memref<1x128xf32, #tpu.memory_space<vmem>>, vector<1x128xf32>
    tpu.vector_store %arg6[%c0_12, %c0_13], %16 {strides = array<i32>} : memref<1x128xf32, #tpu.memory_space<vmem>>, vector<1x128xf32>,
    return
  }
  func.func @transform_0(%arg0: i32) -> (i32, i32) {
    %c0_i32 = arith.constant 0 : i32
    %c0_i32_0 = arith.constant 0 : i32
    return %arg0, %c0_i32 : i32, i32
  }
  func.func @transform_1(%arg0: i32) -> (i32, i32) {
    %c0_i32 = arith.constant 0 : i32
    %c0_i32_0 = arith.constant 0 : i32
    %c0_i32_1 = arith.constant 0 : i32
    return %c0_i32, %c0_i32_0 : i32, i32
  }
  func.func @transform_2(%arg0: i32) -> (i32, i32) {
    %c0_i32 = arith.constant 0 : i32
    %c0_i32_0 = arith.constant 0 : i32
    %c0_i32_1 = arith.constant 0 : i32
    return %c0_i32, %c0_i32_0 : i32, i32
  }
  func.func @transform_3(%arg0: i32) -> (i32, i32) {
    %c0_i32 = arith.constant 0 : i32
    %c0_i32_0 = arith.constant 0 : i32
    %c0_i32_1 = arith.constant 0 : i32
    return %c0_i32, %c0_i32_0 : i32, i32
  }
  func.func @transform_4(%arg0: i32) -> (i32, i32) {
    %c0_i32 = arith.constant 0 : i32
    %c0_i32_0 = arith.constant 0 : i32
    %c0_i32_1 = arith.constant 0 : i32
    return %c0_i32, %c0_i32_0 : i32, i32
  }
  func.func @transform_5(%arg0: i32) -> (i32, i32) {
    %c0_i32 = arith.constant 0 : i32
    %c0_i32_0 = arith.constant 0 : i32
    return %c0_i32, %arg0 : i32, i32
  }
}

</mosaic_0001>

<llo_original>
// kernel: push_net_forward.1
$region0: #{push_net_forward.1}
  #allocation0 [shape = 'u32[]', space=smem, size = 0x4, offset = 0x4, fixed_abs, tag = 'smem constant byte address 0x4 - core index']
  #allocation1 [shape = 'u32[72,128]{1,0:T(1,128)}', space=vmem, size = 0x9000, scoped, tag = 'internal scratch']
  %s0 = inlined_call_operand.vmem [shape: bf16[128,2048], index: 0, kind: input, shape index: {}]
  %s1 = inlined_call_operand.vmem [shape: f32[1,2048], index: 1, kind: input, shape index: {}]
  %s2 = inlined_call_operand.vmem [shape: bf16[2048,64], index: 2, kind: input, shape index: {}]
  %s3 = inlined_call_operand.vmem [shape: f32[1,64], index: 3, kind: input, shape index: {}]
  %s4 = inlined_call_operand.vmem [shape: f32[1,64], index: 4, kind: input, shape index: {}]
  %s5 = inlined_call_operand.vmem [shape: f32[1,128], index: 5, kind: output, shape index: {}]
  %s6 = sld [smem:[#allocation0]]
  $region30: #{push_net_forward.1} parent=0
    _
  %s8 = ssub.s32 1, %s6
  %s9 = scalar_select 0, %s8, %s6
  // Predicated region
  $region2: #{push_net_forward.1} parent=0 // pred_check
    _
  $region3: #{push_net_forward.1} parent=0 // pred_check_branch
    %11 = sbr.rel (0) target = $region5
  $region4: #{push_net_forward.1} parent=0 // pred_region
    _
  $region5: #{push_net_forward.1} parent=0 // pred_fallthru
    _
  // Predicated region
  $region6: #{push_net_forward.1} parent=0 // pred_check
    _
  $region7: #{push_net_forward.1} parent=0 // pred_check_branch
    %13 = sbr.rel (0) target = $region9
  $region8: #{push_net_forward.1} parent=0 // pred_region
    _
  $region9: #{push_net_forward.1} parent=0 // pred_fallthru
    _
  // Predicated region
  $region10: #{push_net_forward.1} parent=0 // pred_check
    _
  $region11: #{push_net_forward.1} parent=0 // pred_check_branch
    %15 = sbr.rel (0) target = $region13
  $region12: #{push_net_forward.1} parent=0 // pred_region
    _
  $region13: #{push_net_forward.1} parent=0 // pred_fallthru
    _
  // Predicated region
  $region14: #{push_net_forward.1} parent=0 // pred_check
    _
  $region15: #{push_net_forward.1} parent=0 // pred_check_branch
    %17 = sbr.rel (0) target = $region17
  $region16: #{push_net_forward.1} parent=0 // pred_region
    _
  $region17: #{push_net_forward.1} parent=0 // pred_fallthru
    _
  // Predicated region
  $region18: #{push_net_forward.1} parent=0 // pred_check
    _
  $region19: #{push_net_forward.1} parent=0 // pred_check_branch
    %19 = sbr.rel (0) target = $region21
  $region20: #{push_net_forward.1} parent=0 // pred_region
    _
  $region21: #{push_net_forward.1} parent=0 // pred_fallthru
    _
  %v20 = vld [vmem:[%s0] sm:$0xff]
  %v21 = vld [vmem:[%s0 + $0x8] sm:$0xff]
  %v22 = vld [vmem:[%s0 + $0x10] sm:$0xff]
  %v23 = vld [vmem:[%s0 + $0x18] sm:$0xff]
  %v24 = vld [vmem:[%s0 + $0x20] sm:$0xff]
  %v25 = vld [vmem:[%s0 + $0x28] sm:$0xff]
  %v26 = vld [vmem:[%s0 + $0x30] sm:$0xff]
  %v27 = vld [vmem:[%s0 + $0x38] sm:$0xff]
  %v28 = vld [vmem:[%s0 + $0x40] sm:$0xff]
  %v29 = vld [vmem:[%s0 + $0x48] sm:$0xff]
  %v30 = vld [vmem:[%s0 + $0x50] sm:$0xff]
  %v31 = vld [vmem:[%s0 + $0x58] sm:$0xff]
  %v32 = vld [vmem:[%s0 + $0x60] sm:$0xff]
  %v33 = vld [vmem:[%s0 + $0x68] sm:$0xff]
  %v34 = vld [vmem:[%s0 + $0x70] sm:$0xff]
  %v35 = vld [vmem:[%s0 + $0x78] sm:$0xff]
  %v36 = vld [vmem:[%s0 + $0x80] sm:$0xff]
  %v37 = vld [vmem:[%s0 + $0x88] sm:$0xff]
  %v38 = vld [vmem:[%s0 + $0x90] sm:$0xff]
  %v39 = vld [vmem:[%s0 + $0x98] sm:$0xff]
  %v40 = vld [vmem:[%s0 + $0xa0] sm:$0xff]
  %v41 = vld [vmem:[%s0 + $0xa8] sm:$0xff]
  %v42 = vld [vmem:[%s0 + $0xb0] sm:$0xff]
  %v43 = vld [vmem:[%s0 + $0xb8] sm:$0xff]
  %v44 = vld [vmem:[%s0 + $0xc0] sm:$0xff]
  %v45 = vld [vmem:[%s0 + $0xc8] sm:$0xff]
  %v46 = vld [vmem:[%s0 + $0xd0] sm:$0xff]
  %v47 = vld [vmem:[%s0 + $0xd8] sm:$0xff]
  %v48 = vld [vmem:[%s0 + $0xe0] sm:$0xff]
  %v49 = vld [vmem:[%s0 + $0xe8] sm:$0xff]
  %v50 = vld [vmem:[%s0 + $0xf0] sm:$0xff]
  %v51 = vld [vmem:[%s0 + $0xf8] sm:$0xff]
  %v52 = vld [vmem:[%s0 + $0x100] sm:$0xff]
  %v53 = vld [vmem:[%s0 + $0x108] sm:$0xff]
  %v54 = vld [vmem:[%s0 + $0x110] sm:$0xff]
  %v55 = vld [vmem:[%s0 + $0x118] sm:$0xff]
  %v56 = vld [vmem:[%s0 + $0x120] sm:$0xff]
  %v57 = vld [vmem:[%s0 + $0x128] sm:$0xff]
  %v58 = vld [vmem:[%s0 + $0x130] sm:$0xff]
  %v59 = vld [vmem:[%s0 + $0x138] sm:$0xff]
  %v60 = vld [vmem:[%s0 + $0x140] sm:$0xff]
  %v61 = vld [vmem:[%s0 + $0x148] sm:$0xff]
  %v62 = vld [vmem:[%s0 + $0x150] sm:$0xff]
  %v63 = vld [vmem:[%s0 + $0x158] sm:$0xff]
  %v64 = vld [vmem:[%s0 + $0x160] sm:$0xff]
  %v65 = vld [vmem:[%s0 + $0x168] sm:$0xff]
  %v66 = vld [vmem:[%s0 + $0x170] sm:$0xff]
  %v67 = vld [vmem:[%s0 + $0x178] sm:$0xff]
  %v68 = vld [vmem:[%s0 + $0x180] sm:$0xff]
  %v69 = vld [vmem:[%s0 + $0x188] sm:$0xff]
  %v70 = vld [vmem:[%s0 + $0x190] sm:$0xff]
  %v71 = vld [vmem:[%s0 + $0x198] sm:$0xff]
  %v72 = vld [vmem:[%s0 + $0x1a0] sm:$0xff]
  %v73 = vld [vmem:[%s0 + $0x1a8] sm:$0xff]
  %v74 = vld [vmem:[%s0 + $0x1b0] sm:$0xff]
  %v75 = vld [vmem:[%s0 + $0x1b8] sm:$0xff]
  %v76 = vld [vmem:[%s0 + $0x1c0] sm:$0xff]
  %v77 = vld [vmem:[%s0 + $0x1c8] sm:$0xff]
  %v78 = vld [vmem:[%s0 + $0x1d0] sm:$0xff]
  %v79 = vld [vmem:[%s0 + $0x1d8] sm:$0xff]
  %v80 = vld [vmem:[%s0 + $0x1e0] sm:$0xff]
  %v81 = vld [vmem:[%s0 + $0x1e8] sm:$0xff]
  %v82 = vld [vmem:[%s0 + $0x1f0] sm:$0xff]
  %v83 = vld [vmem:[%s0 + $0x1f8] sm:$0xff]
  %v84 = vld [vmem:[%s0 + $0x200] sm:$0xff]
  %v85 = vld [vmem:[%s0 + $0x208] sm:$0xff]
  %v86 = vld [vmem:[%s0 + $0x210] sm:$0xff]
  %v87 = vld [vmem:[%s0 + $0x218] sm:$0xff]
  %v88 = vld [vmem:[%s0 + $0x220] sm:$0xff]
  %v89 = vld [vmem:[%s0 + $0x228] sm:$0xff]
  %v90 = vld [vmem:[%s0 + $0x230] sm:$0xff]
  %v91 = vld [vmem:[%s0 + $0x238] sm:$0xff]
  %v92 = vld [vmem:[%s0 + $0x240] sm:$0xff]
  %v93 = vld [vmem:[%s0 + $0x248] sm:$0xff]
  %v94 = vld [vmem:[%s0 + $0x250] sm:$0xff]
  %v95 = vld [vmem:[%s0 + $0x258] sm:$0xff]
  %v96 = vld [vmem:[%s0 + $0x260] sm:$0xff]
  %v97 = vld [vmem:[%s0 + $0x268] sm:$0xff]
  %v98 = vld [vmem:[%s0 + $0x270] sm:$0xff]
  %v99 = vld [vmem:[%s0 + $0x278] sm:$0xff]
  %v100 = vld [vmem:[%s0 + $0x280] sm:$0xff]
  %v101 = vld [vmem:[%s0 + $0x288] sm:$0xff]
  %v102 = vld [vmem:[%s0 + $0x290] sm:$0xff]
  %v103 = vld [vmem:[%s0 + $0x298] sm:$0xff]
  %v104 = vld [vmem:[%s0 + $0x2a0] sm:$0xff]
  %v105 = vld [vmem:[%s0 + $0x2a8] sm:$0xff]
  %v106 = vld [vmem:[%s0 + $0x2b0] sm:$0xff]
  %v107 = vld [vmem:[%s0 + $0x2b8] sm:$0xff]
  %v108 = vld [vmem:[%s0 + $0x2c0] sm:$0xff]
  %v109 = vld [vmem:[%s0 + $0x2c8] sm:$0xff]
  %v110 = vld [vmem:[%s0 + $0x2d0] sm:$0xff]
  %v111 = vld [vmem:[%s0 + $0x2d8] sm:$0xff]
  %v112 = vld [vmem:[%s0 + $0x2e0] sm:$0xff]
  %v113 = vld [vmem:[%s0 + $0x2e8] sm:$0xff]
  %v114 = vld [vmem:[%s0 + $0x2f0] sm:$0xff]
  %v115 = vld [vmem:[%s0 + $0x2f8] sm:$0xff]
  %v116 = vld [vmem:[%s0 + $0x300] sm:$0xff]
  %v117 = vld [vmem:[%s0 + $0x308] sm:$0xff]
  %v118 = vld [vmem:[%s0 + $0x310] sm:$0xff]
  %v119 = vld [vmem:[%s0 + $0x318] sm:$0xff]
  %v120 = vld [vmem:[%s0 + $0x320] sm:$0xff]
  %v121 = vld [vmem:[%s0 + $0x328] sm:$0xff]
  %v122 = vld [vmem:[%s0 + $0x330] sm:$0xff]
  %v123 = vld [vmem:[%s0 + $0x338] sm:$0xff]
  %v124 = vld [vmem:[%s0 + $0x340] sm:$0xff]
  %v125 = vld [vmem:[%s0 + $0x348] sm:$0xff]
  %v126 = vld [vmem:[%s0 + $0x350] sm:$0xff]
  %v127 = vld [vmem:[%s0 + $0x358] sm:$0xff]
  %v128 = vld [vmem:[%s0 + $0x360] sm:$0xff]
  %v129 = vld [vmem:[%s0 + $0x368] sm:$0xff]
  %v130 = vld [vmem:[%s0 + $0x370] sm:$0xff]
  %v131 = vld [vmem:[%s0 + $0x378] sm:$0xff]
  %v132 = vld [vmem:[%s0 + $0x380] sm:$0xff]
  %v133 = vld [vmem:[%s0 + $0x388] sm:$0xff]
  %v134 = vld [vmem:[%s0 + $0x390] sm:$0xff]
  %v135 = vld [vmem:[%s0 + $0x398] sm:$0xff]
  %v136 = vld [vmem:[%s0 + $0x3a0] sm:$0xff]
  %v137 = vld [vmem:[%s0 + $0x3a8] sm:$0xff]
  %v138 = vld [vmem:[%s0 + $0x3b0] sm:$0xff]
  %v139 = vld [vmem:[%s0 + $0x3b8] sm:$0xff]
  %v140 = vld [vmem:[%s0 + $0x3c0] sm:$0xff]
  %v141 = vld [vmem:[%s0 + $0x3c8] sm:$0xff]
  %v142 = vld [vmem:[%s0 + $0x3d0] sm:$0xff]
  %v143 = vld [vmem:[%s0 + $0x3d8] sm:$0xff]
  %v144 = vld [vmem:[%s0 + $0x3e0] sm:$0xff]
  %v145 = vld [vmem:[%s0 + $0x3e8] sm:$0xff]
  %v146 = vld [vmem:[%s0 + $0x3f0] sm:$0xff]
  %v147 = vld [vmem:[%s0 + $0x3f8] sm:$0xff]
  %v148 = vunpack.c.l.bf16 %v20
  %v149 = vunpack.c.h.bf16 %v20
  %v150 = vunpack.c.l.bf16 %v21
  %v151 = vunpack.c.h.bf16 %v21
  %v152 = vunpack.c.l.bf16 %v22
  %v153 = vunpack.c.h.bf16 %v22
  %v154 = vunpack.c.l.bf16 %v23
  %v155 = vunpack.c.h.bf16 %v23
  %v156 = vunpack.c.l.bf16 %v24
  %v157 = vunpack.c.h.bf16 %v24
  %v158 = vunpack.c.l.bf16 %v25
  %v159 = vunpack.c.h.bf16 %v25
  %v160 = vunpack.c.l.bf16 %v26
  %v161 = vunpack.c.h.bf16 %v26
  %v162 = vunpack.c.l.bf16 %v27
  %v163 = vunpack.c.h.bf16 %v27
  %v164 = vunpack.c.l.bf16 %v28
  %v165 = vunpack.c.h.bf16 %v28
  %v166 = vunpack.c.l.bf16 %v29
  %v167 = vunpack.c.h.bf16 %v29
  %v168 = vunpack.c.l.bf16 %v30
  %v169 = vunpack.c.h.bf16 %v30
  %v170 = vunpack.c.l.bf16 %v31
  %v171 = vunpack.c.h.bf16 %v31
  %v172 = vunpack.c.l.bf16 %v32
  %v173 = vunpack.c.h.bf16 %v32
  %v174 = vunpack.c.l.bf16 %v33
  %v175 = vunpack.c.h.bf16 %v33
  %v176 = vunpack.c.l.bf16 %v34
  %v177 = vunpack.c.h.bf16 %v34
  %v178 = vunpack.c.l.bf16 %v35
  %v179 = vunpack.c.h.bf16 %v35
  %v180 = vunpack.c.l.bf16 %v36
  %v181 = vunpack.c.h.bf16 %v36
  %v182 = vunpack.c.l.bf16 %v37
  %v183 = vunpack.c.h.bf16 %v37
  %v184 = vunpack.c.l.bf16 %v38
  %v185 = vunpack.c.h.bf16 %v38
  %v186 = vunpack.c.l.bf16 %v39
  %v187 = vunpack.c.h.bf16 %v39
  %v188 = vunpack.c.l.bf16 %v40
  %v189 = vunpack.c.h.bf16 %v40
  %v190 = vunpack.c.l.bf16 %v41
  %v191 = vunpack.c.h.bf16 %v41
  %v192 = vunpack.c.l.bf16 %v42
  %v193 = vunpack.c.h.bf16 %v42
  %v194 = vunpack.c.l.bf16 %v43
  %v195 = vunpack.c.h.bf16 %v43
  %v196 = vunpack.c.l.bf16 %v44
  %v197 = vunpack.c.h.bf16 %v44
  %v198 = vunpack.c.l.bf16 %v45
  %v199 = vunpack.c.h.bf16 %v45
  %v200 = vunpack.c.l.bf16 %v46
  %v201 = vunpack.c.h.bf16 %v46
  %v202 = vunpack.c.l.bf16 %v47
  %v203 = vunpack.c.h.bf16 %v47
  %v204 = vunpack.c.l.bf16 %v48
  %v205 = vunpack.c.h.bf16 %v48
  %v206 = vunpack.c.l.bf16 %v49
  %v207 = vunpack.c.h.bf16 %v49
  %v208 = vunpack.c.l.bf16 %v50
  %v209 = vunpack.c.h.bf16 %v50
  %v210 = vunpack.c.l.bf16 %v51
  %v211 = vunpack.c.h.bf16 %v51
  %v212 = vunpack.c.l.bf16 %v52
  %v213 = vunpack.c.h.bf16 %v52
  %v214 = vunpack.c.l.bf16 %v53
  %v215 = vunpack.c.h.bf16 %v53
  %v216 = vunpack.c.l.bf16 %v54
  %v217 = vunpack.c.h.bf16 %v54
  %v218 = vunpack.c.l.bf16 %v55
  %v219 = vunpack.c.h.bf16 %v55
  %v220 = vunpack.c.l.bf16 %v56
  %v221 = vunpack.c.h.bf16 %v56
  %v222 = vunpack.c.l.bf16 %v57
  %v223 = vunpack.c.h.bf16 %v57
  %v224 = vunpack.c.l.bf16 %v58
  %v225 = vunpack.c.h.bf16 %v58
  %v226 = vunpack.c.l.bf16 %v59
  %v227 = vunpack.c.h.bf16 %v59
  %v228 = vunpack.c.l.bf16 %v60
  %v229 = vunpack.c.h.bf16 %v60
  %v230 = vunpack.c.l.bf16 %v61
  %v231 = vunpack.c.h.bf16 %v61
  %v232 = vunpack.c.l.bf16 %v62
  %v233 = vunpack.c.h.bf16 %v62
  %v234 = vunpack.c.l.bf16 %v63
  %v235 = vunpack.c.h.bf16 %v63
  %v236 = vunpack.c.l.bf16 %v64
  %v237 = vunpack.c.h.bf16 %v64
  %v238 = vunpack.c.l.bf16 %v65
  %v239 = vunpack.c.h.bf16 %v65
  %v240 = vunpack.c.l.bf16 %v66
  %v241 = vunpack.c.h.bf16 %v66
  %v242 = vunpack.c.l.bf16 %v67
  %v243 = vunpack.c.h.bf16 %v67
  %v244 = vunpack.c.l.bf16 %v68
  %v245 = vunpack.c.h.bf16 %v68
  %v246 = vunpack.c.l.bf16 %v69
  %v247 = vunpack.c.h.bf16 %v69
  %v248 = vunpack.c.l.bf16 %v70
  %v249 = vunpack.c.h.bf16 %v70
  %v250 = vunpack.c.l.bf16 %v71
  %v251 = vunpack.c.h.bf16 %v71
  %v252 = vunpack.c.l.bf16 %v72
  %v253 = vunpack.c.h.bf16 %v72
  %v254 = vunpack.c.l.bf16 %v73
  %v255 = vunpack.c.h.bf16 %v73
  %v256 = vunpack.c.l.bf16 %v74
  %v257 = vunpack.c.h.bf16 %v74
  %v258 = vunpack.c.l.bf16 %v75
  %v259 = vunpack.c.h.bf16 %v75
  %v260 = vunpack.c.l.bf16 %v76
  %v261 = vunpack.c.h.bf16 %v76
  %v262 = vunpack.c.l.bf16 %v77
  %v263 = vunpack.c.h.bf16 %v77
  %v264 = vunpack.c.l.bf16 %v78
  %v265 = vunpack.c.h.bf16 %v78
  %v266 = vunpack.c.l.bf16 %v79
  %v267 = vunpack.c.h.bf16 %v79
  %v268 = vunpack.c.l.bf16 %v80
  %v269 = vunpack.c.h.bf16 %v80
  %v270 = vunpack.c.l.bf16 %v81
  %v271 = vunpack.c.h.bf16 %v81
  %v272 = vunpack.c.l.bf16 %v82
  %v273 = vunpack.c.h.bf16 %v82
  %v274 = vunpack.c.l.bf16 %v83
  %v275 = vunpack.c.h.bf16 %v83
  %v276 = vunpack.c.l.bf16 %v84
  %v277 = vunpack.c.h.bf16 %v84
  %v278 = vunpack.c.l.bf16 %v85
  %v279 = vunpack.c.h.bf16 %v85
  %v280 = vunpack.c.l.bf16 %v86
  %v281 = vunpack.c.h.bf16 %v86
  %v282 = vunpack.c.l.bf16 %v87
  %v283 = vunpack.c.h.bf16 %v87
  %v284 = vunpack.c.l.bf16 %v88
  %v285 = vunpack.c.h.bf16 %v88
  %v286 = vunpack.c.l.bf16 %v89
  %v287 = vunpack.c.h.bf16 %v89
  %v288 = vunpack.c.l.bf16 %v90
  %v289 = vunpack.c.h.bf16 %v90
  %v290 = vunpack.c.l.bf16 %v91
  %v291 = vunpack.c.h.bf16 %v91
  %v292 = vunpack.c.l.bf16 %v92
  %v293 = vunpack.c.h.bf16 %v92
  %v294 = vunpack.c.l.bf16 %v93
  %v295 = vunpack.c.h.bf16 %v93
  %v296 = vunpack.c.l.bf16 %v94
  %v297 = vunpack.c.h.bf16 %v94
  %v298 = vunpack.c.l.bf16 %v95
  %v299 = vunpack.c.h.bf16 %v95
  %v300 = vunpack.c.l.bf16 %v96
  %v301 = vunpack.c.h.bf16 %v96
  %v302 = vunpack.c.l.bf16 %v97
  %v303 = vunpack.c.h.bf16 %v97
  %v304 = vunpack.c.l.bf16 %v98
  %v305 = vunpack.c.h.bf16 %v98
  %v306 = vunpack.c.l.bf16 %v99
  %v307 = vunpack.c.h.bf16 %v99
  %v308 = vunpack.c.l.bf16 %v100
  %v309 = vunpack.c.h.bf16 %v100
  %v310 = vunpack.c.l.bf16 %v101
  %v311 = vunpack.c.h.bf16 %v101
  %v312 = vunpack.c.l.bf16 %v102
  %v313 = vunpack.c.h.bf16 %v102
  %v314 = vunpack.c.l.bf16 %v103
  %v315 = vunpack.c.h.bf16 %v103
  %v316 = vunpack.c.l.bf16 %v104
  %v317 = vunpack.c.h.bf16 %v104
  %v318 = vunpack.c.l.bf16 %v105
  %v319 = vunpack.c.h.bf16 %v105
  %v320 = vunpack.c.l.bf16 %v106
  %v321 = vunpack.c.h.bf16 %v106
  %v322 = vunpack.c.l.bf16 %v107
  %v323 = vunpack.c.h.bf16 %v107
  %v324 = vunpack.c.l.bf16 %v108
  %v325 = vunpack.c.h.bf16 %v108
  %v326 = vunpack.c.l.bf16 %v109
  %v327 = vunpack.c.h.bf16 %v109
  %v328 = vunpack.c.l.bf16 %v110
  %v329 = vunpack.c.h.bf16 %v110
  %v330 = vunpack.c.l.bf16 %v111
  %v331 = vunpack.c.h.bf16 %v111
  %v332 = vunpack.c.l.bf16 %v112
  %v333 = vunpack.c.h.bf16 %v112
  %v334 = vunpack.c.l.bf16 %v113
  %v335 = vunpack.c.h.bf16 %v113
  %v336 = vunpack.c.l.bf16 %v114
  %v337 = vunpack.c.h.bf16 %v114
  %v338 = vunpack.c.l.bf16 %v115
  %v339 = vunpack.c.h.bf16 %v115
  %v340 = vunpack.c.l.bf16 %v116
  %v341 = vunpack.c.h.bf16 %v116
  %v342 = vunpack.c.l.bf16 %v117
  %v343 = vunpack.c.h.bf16 %v117
  %v344 = vunpack.c.l.bf16 %v118
  %v345 = vunpack.c.h.bf16 %v118
  %v346 = vunpack.c.l.bf16 %v119
  %v347 = vunpack.c.h.bf16 %v119
  %v348 = vunpack.c.l.bf16 %v120
  %v349 = vunpack.c.h.bf16 %v120
  %v350 = vunpack.c.l.bf16 %v121
  %v351 = vunpack.c.h.bf16 %v121
  %v352 = vunpack.c.l.bf16 %v122
  %v353 = vunpack.c.h.bf16 %v122
  %v354 = vunpack.c.l.bf16 %v123
  %v355 = vunpack.c.h.bf16 %v123
  %v356 = vunpack.c.l.bf16 %v124
  %v357 = vunpack.c.h.bf16 %v124
  %v358 = vunpack.c.l.bf16 %v125
  %v359 = vunpack.c.h.bf16 %v125
  %v360 = vunpack.c.l.bf16 %v126
  %v361 = vunpack.c.h.bf16 %v126
  %v362 = vunpack.c.l.bf16 %v127
  %v363 = vunpack.c.h.bf16 %v127
  %v364 = vunpack.c.l.bf16 %v128
  %v365 = vunpack.c.h.bf16 %v128
  %v366 = vunpack.c.l.bf16 %v129
  %v367 = vunpack.c.h.bf16 %v129
  %v368 = vunpack.c.l.bf16 %v130
  %v369 = vunpack.c.h.bf16 %v130
  %v370 = vunpack.c.l.bf16 %v131
  %v371 = vunpack.c.h.bf16 %v131
  %v372 = vunpack.c.l.bf16 %v132
  %v373 = vunpack.c.h.bf16 %v132
  %v374 = vunpack.c.l.bf16 %v133
  %v375 = vunpack.c.h.bf16 %v133
  %v376 = vunpack.c.l.bf16 %v134
  %v377 = vunpack.c.h.bf16 %v134
  %v378 = vunpack.c.l.bf16 %v135
  %v379 = vunpack.c.h.bf16 %v135
  %v380 = vunpack.c.l.bf16 %v136
  %v381 = vunpack.c.h.bf16 %v136
  %v382 = vunpack.c.l.bf16 %v137
  %v383 = vunpack.c.h.bf16 %v137
  %v384 = vunpack.c.l.bf16 %v138
  %v385 = vunpack.c.h.bf16 %v138
  %v386 = vunpack.c.l.bf16 %v139
  %v387 = vunpack.c.h.bf16 %v139
  %v388 = vunpack.c.l.bf16 %v140
  %v389 = vunpack.c.h.bf16 %v140
  %v390 = vunpack.c.l.bf16 %v141
  %v391 = vunpack.c.h.bf16 %v141
  %v392 = vunpack.c.l.bf16 %v142
  %v393 = vunpack.c.h.bf16 %v142
  %v394 = vunpack.c.l.bf16 %v143
  %v395 = vunpack.c.h.bf16 %v143
  %v396 = vunpack.c.l.bf16 %v144
  %v397 = vunpack.c.h.bf16 %v144
  %v398 = vunpack.c.l.bf16 %v145
  %v399 = vunpack.c.h.bf16 %v145
  %v400 = vunpack.c.l.bf16 %v146
  %v401 = vunpack.c.h.bf16 %v146
  %v402 = vunpack.c.l.bf16 %v147
  %v403 = vunpack.c.h.bf16 %v147
  %v404 = vld [vmem:[%s1] sm:$0xff]
  %v405 = vld [vmem:[%s1 + $0x8] sm:$0xff]
  %v408 = vperm.slane %v404, 0
  %v409 = vperm.slane %v404, 1
  %v410 = vperm.slane %v404, 2
  %v411 = vperm.slane %v404, 3
  %v412 = vperm.slane %v404, 4
  %v413 = vperm.slane %v404, 5
  %v414 = vperm.slane %v404, 6
  %v415 = vperm.slane %v404, 7
  %v416 = vperm.slane %v405, 0
  %v417 = vperm.slane %v405, 1
  %v418 = vperm.slane %v405, 2
  %v419 = vperm.slane %v405, 3
  %v420 = vperm.slane %v405, 4
  %v421 = vperm.slane %v405, 5
  %v422 = vperm.slane %v405, 6
  %v423 = vperm.slane %v405, 7
  %v440 = vadd.f32 %v148, %v408
  %v441 = vadd.f32 %v149, %v409
  %v442 = vadd.f32 %v150, %v410
  %v443 = vadd.f32 %v151, %v411
  %v444 = vadd.f32 %v152, %v412
  %v445 = vadd.f32 %v153, %v413
  %v446 = vadd.f32 %v154, %v414
  %v447 = vadd.f32 %v155, %v415
  %v448 = vadd.f32 %v156, %v416
  %v449 = vadd.f32 %v157, %v417
  %v450 = vadd.f32 %v158, %v418
  %v451 = vadd.f32 %v159, %v419
  %v452 = vadd.f32 %v160, %v420
  %v453 = vadd.f32 %v161, %v421
  %v454 = vadd.f32 %v162, %v422
  %v455 = vadd.f32 %v163, %v423
  %v456 = vadd.f32 %v164, %v408
  %v457 = vadd.f32 %v165, %v409
  %v458 = vadd.f32 %v166, %v410
  %v459 = vadd.f32 %v167, %v411
  %v460 = vadd.f32 %v168, %v412
  %v461 = vadd.f32 %v169, %v413
  %v462 = vadd.f32 %v170, %v414
  %v463 = vadd.f32 %v171, %v415
  %v464 = vadd.f32 %v172, %v416
  %v465 = vadd.f32 %v173, %v417
  %v466 = vadd.f32 %v174, %v418
  %v467 = vadd.f32 %v175, %v419
  %v468 = vadd.f32 %v176, %v420
  %v469 = vadd.f32 %v177, %v421
  %v470 = vadd.f32 %v178, %v422
  %v471 = vadd.f32 %v179, %v423
  %v472 = vadd.f32 %v180, %v408
  %v473 = vadd.f32 %v181, %v409
  %v474 = vadd.f32 %v182, %v410
  %v475 = vadd.f32 %v183, %v411
  %v476 = vadd.f32 %v184, %v412
  %v477 = vadd.f32 %v185, %v413
  %v478 = vadd.f32 %v186, %v414
  %v479 = vadd.f32 %v187, %v415
  %v480 = vadd.f32 %v188, %v416
  %v481 = vadd.f32 %v189, %v417
  %v482 = vadd.f32 %v190, %v418
  %v483 = vadd.f32 %v191, %v419
  %v484 = vadd.f32 %v192, %v420
  %v485 = vadd.f32 %v193, %v421
  %v486 = vadd.f32 %v194, %v422
  %v487 = vadd.f32 %v195, %v423
  %v488 = vadd.f32 %v196, %v408
  %v489 = vadd.f32 %v197, %v409
  %v490 = vadd.f32 %v198, %v410
  %v491 = vadd.f32 %v199, %v411
  %v492 = vadd.f32 %v200, %v412
  %v493 = vadd.f32 %v201, %v413
  %v494 = vadd.f32 %v202, %v414
  %v495 = vadd.f32 %v203, %v415
  %v496 = vadd.f32 %v204, %v416
  %v497 = vadd.f32 %v205, %v417
  %v498 = vadd.f32 %v206, %v418
  %v499 = vadd.f32 %v207, %v419
  %v500 = vadd.f32 %v208, %v420
  %v501 = vadd.f32 %v209, %v421
  %v502 = vadd.f32 %v210, %v422
  %v503 = vadd.f32 %v211, %v423
  %v504 = vadd.f32 %v212, %v408
  %v505 = vadd.f32 %v213, %v409
  %v506 = vadd.f32 %v214, %v410
  %v507 = vadd.f32 %v215, %v411
  %v508 = vadd.f32 %v216, %v412
  %v509 = vadd.f32 %v217, %v413
  %v510 = vadd.f32 %v218, %v414
  %v511 = vadd.f32 %v219, %v415
  %v512 = vadd.f32 %v220, %v416
  %v513 = vadd.f32 %v221, %v417
  %v514 = vadd.f32 %v222, %v418
  %v515 = vadd.f32 %v223, %v419
  %v516 = vadd.f32 %v224, %v420
  %v517 = vadd.f32 %v225, %v421
  %v518 = vadd.f32 %v226, %v422
  %v519 = vadd.f32 %v227, %v423
  %v520 = vadd.f32 %v228, %v408
  %v521 = vadd.f32 %v229, %v409
  %v522 = vadd.f32 %v230, %v410
  %v523 = vadd.f32 %v231, %v411
  %v524 = vadd.f32 %v232, %v412
  %v525 = vadd.f32 %v233, %v413
  %v526 = vadd.f32 %v234, %v414
  %v527 = vadd.f32 %v235, %v415
  %v528 = vadd.f32 %v236, %v416
  %v529 = vadd.f32 %v237, %v417
  %v530 = vadd.f32 %v238, %v418
  %v531 = vadd.f32 %v239, %v419
  %v532 = vadd.f32 %v240, %v420
  %v533 = vadd.f32 %v241, %v421
  %v534 = vadd.f32 %v242, %v422
  %v535 = vadd.f32 %v243, %v423
  %v536 = vadd.f32 %v244, %v408
  %v537 = vadd.f32 %v245, %v409
  %v538 = vadd.f32 %v246, %v410
  %v539 = vadd.f32 %v247, %v411
  %v540 = vadd.f32 %v248, %v412
  %v541 = vadd.f32 %v249, %v413
  %v542 = vadd.f32 %v250, %v414
  %v543 = vadd.f32 %v251, %v415
  %v544 = vadd.f32 %v252, %v416
  %v545 = vadd.f32 %v253, %v417
  %v546 = vadd.f32 %v254, %v418
  %v547 = vadd.f32 %v255, %v419
  %v548 = vadd.f32 %v256, %v420
  %v549 = vadd.f32 %v257, %v421
  %v550 = vadd.f32 %v258, %v422
  %v551 = vadd.f32 %v259, %v423
  %v552 = vadd.f32 %v260, %v408
  %v553 = vadd.f32 %v261, %v409
  %v554 = vadd.f32 %v262, %v410
  %v555 = vadd.f32 %v263, %v411
  %v556 = vadd.f32 %v264, %v412
  %v557 = vadd.f32 %v265, %v413
  %v558 = vadd.f32 %v266, %v414
  %v559 = vadd.f32 %v267, %v415
  %v560 = vadd.f32 %v268, %v416
  %v561 = vadd.f32 %v269, %v417
  %v562 = vadd.f32 %v270, %v418
  %v563 = vadd.f32 %v271, %v419
  %v564 = vadd.f32 %v272, %v420
  %v565 = vadd.f32 %v273, %v421
  %v566 = vadd.f32 %v274, %v422
  %v567 = vadd.f32 %v275, %v423
  %v568 = vadd.f32 %v276, %v408
  %v569 = vadd.f32 %v277, %v409
  %v570 = vadd.f32 %v278, %v410
  %v571 = vadd.f32 %v279, %v411
  %v572 = vadd.f32 %v280, %v412
  %v573 = vadd.f32 %v281, %v413
  %v574 = vadd.f32 %v282, %v414
  %v575 = vadd.f32 %v283, %v415
  %v576 = vadd.f32 %v284, %v416
  %v577 = vadd.f32 %v285, %v417
  %v578 = vadd.f32 %v286, %v418
  %v579 = vadd.f32 %v287, %v419
  %v580 = vadd.f32 %v288, %v420
  %v581 = vadd.f32 %v289, %v421
  %v582 = vadd.f32 %v290, %v422
  %v583 = vadd.f32 %v291, %v423
  %v584 = vadd.f32 %v292, %v408
  %v585 = vadd.f32 %v293, %v409
  %v586 = vadd.f32 %v294, %v410
  %v587 = vadd.f32 %v295, %v411
  %v588 = vadd.f32 %v296, %v412
  %v589 = vadd.f32 %v297, %v413
  %v590 = vadd.f32 %v298, %v414
  %v591 = vadd.f32 %v299, %v415
  %v592 = vadd.f32 %v300, %v416
  %v593 = vadd.f32 %v301, %v417
  %v594 = vadd.f32 %v302, %v418
  %v595 = vadd.f32 %v303, %v419
  %v596 = vadd.f32 %v304, %v420
  %v597 = vadd.f32 %v305, %v421
  %v598 = vadd.f32 %v306, %v422
  %v599 = vadd.f32 %v307, %v423
  %v600 = vadd.f32 %v308, %v408
  %v601 = vadd.f32 %v309, %v409
  %v602 = vadd.f32 %v310, %v410
  %v603 = vadd.f32 %v311, %v411
  %v604 = vadd.f32 %v312, %v412
  %v605 = vadd.f32 %v313, %v413
  %v606 = vadd.f32 %v314, %v414
  %v607 = vadd.f32 %v315, %v415
  %v608 = vadd.f32 %v316, %v416
  %v609 = vadd.f32 %v317, %v417
  %v610 = vadd.f32 %v318, %v418
  %v611 = vadd.f32 %v319, %v419
  %v612 = vadd.f32 %v320, %v420
  %v613 = vadd.f32 %v321, %v421
  %v614 = vadd.f32 %v322, %v422
  %v615 = vadd.f32 %v323, %v423
  %v616 = vadd.f32 %v324, %v408
  %v617 = vadd.f32 %v325, %v409
  %v618 = vadd.f32 %v326, %v410
  %v619 = vadd.f32 %v327, %v411
  %v620 = vadd.f32 %v328, %v412
  %v621 = vadd.f32 %v329, %v413
  %v622 = vadd.f32 %v330, %v414
  %v623 = vadd.f32 %v331, %v415
  %v624 = vadd.f32 %v332, %v416
  %v625 = vadd.f32 %v333, %v417
  %v626 = vadd.f32 %v334, %v418
  %v627 = vadd.f32 %v335, %v419
  %v628 = vadd.f32 %v336, %v420
  %v629 = vadd.f32 %v337, %v421
  %v630 = vadd.f32 %v338, %v422
  %v631 = vadd.f32 %v339, %v423
  %v632 = vadd.f32 %v340, %v408
  %v633 = vadd.f32 %v341, %v409
  %v634 = vadd.f32 %v342, %v410
  %v635 = vadd.f32 %v343, %v411
  %v636 = vadd.f32 %v344, %v412
  %v637 = vadd.f32 %v345, %v413
  %v638 = vadd.f32 %v346, %v414
  %v639 = vadd.f32 %v347, %v415
  %v640 = vadd.f32 %v348, %v416
  %v641 = vadd.f32 %v349, %v417
  %v642 = vadd.f32 %v350, %v418
  %v643 = vadd.f32 %v351, %v419
  %v644 = vadd.f32 %v352, %v420
  %v645 = vadd.f32 %v353, %v421
  %v646 = vadd.f32 %v354, %v422
  %v647 = vadd.f32 %v355, %v423
  %v648 = vadd.f32 %v356, %v408
  %v649 = vadd.f32 %v357, %v409
  %v650 = vadd.f32 %v358, %v410
  %v651 = vadd.f32 %v359, %v411
  %v652 = vadd.f32 %v360, %v412
  %v653 = vadd.f32 %v361, %v413
  %v654 = vadd.f32 %v362, %v414
  %v655 = vadd.f32 %v363, %v415
  %v656 = vadd.f32 %v364, %v416
  %v657 = vadd.f32 %v365, %v417
  %v658 = vadd.f32 %v366, %v418
  %v659 = vadd.f32 %v367, %v419
  %v660 = vadd.f32 %v368, %v420
  %v661 = vadd.f32 %v369, %v421
  %v662 = vadd.f32 %v370, %v422
  %v663 = vadd.f32 %v371, %v423
  %v664 = vadd.f32 %v372, %v408
  %v665 = vadd.f32 %v373, %v409
  %v666 = vadd.f32 %v374, %v410
  %v667 = vadd.f32 %v375, %v411
  %v668 = vadd.f32 %v376, %v412
  %v669 = vadd.f32 %v377, %v413
  %v670 = vadd.f32 %v378, %v414
  %v671 = vadd.f32 %v379, %v415
  %v672 = vadd.f32 %v380, %v416
  %v673 = vadd.f32 %v381, %v417
  %v674 = vadd.f32 %v382, %v418
  %v675 = vadd.f32 %v383, %v419
  %v676 = vadd.f32 %v384, %v420
  %v677 = vadd.f32 %v385, %v421
  %v678 = vadd.f32 %v386, %v422
  %v679 = vadd.f32 %v387, %v423
  %v680 = vadd.f32 %v388, %v408
  %v681 = vadd.f32 %v389, %v409
  %v682 = vadd.f32 %v390, %v410
  %v683 = vadd.f32 %v391, %v411
  %v684 = vadd.f32 %v392, %v412
  %v685 = vadd.f32 %v393, %v413
  %v686 = vadd.f32 %v394, %v414
  %v687 = vadd.f32 %v395, %v415
  %v688 = vadd.f32 %v396, %v416
  %v689 = vadd.f32 %v397, %v417
  %v690 = vadd.f32 %v398, %v418
  %v691 = vadd.f32 %v399, %v419
  %v692 = vadd.f32 %v400, %v420
  %v693 = vadd.f32 %v401, %v421
  %v694 = vadd.f32 %v402, %v422
  %v695 = vadd.f32 %v403, %v423
  %v696 = vmax.f32 %v440, 0.0
  %v697 = vmax.f32 %v441, 0.0
  %v698 = vmax.f32 %v442, 0.0
  %v699 = vmax.f32 %v443, 0.0
  %v700 = vmax.f32 %v444, 0.0
  %v701 = vmax.f32 %v445, 0.0
  %v702 = vmax.f32 %v446, 0.0
  %v703 = vmax.f32 %v447, 0.0
  %v704 = vmax.f32 %v448, 0.0
  %v705 = vmax.f32 %v449, 0.0
  %v706 = vmax.f32 %v450, 0.0
  %v707 = vmax.f32 %v451, 0.0
  %v708 = vmax.f32 %v452, 0.0
  %v709 = vmax.f32 %v453, 0.0
  %v710 = vmax.f32 %v454, 0.0
  %v711 = vmax.f32 %v455, 0.0
  %v712 = vmax.f32 %v456, 0.0
  %v713 = vmax.f32 %v457, 0.0
  %v714 = vmax.f32 %v458, 0.0
  %v715 = vmax.f32 %v459, 0.0
  %v716 = vmax.f32 %v460, 0.0
  %v717 = vmax.f32 %v461, 0.0
  %v718 = vmax.f32 %v462, 0.0
  %v719 = vmax.f32 %v463, 0.0
  %v720 = vmax.f32 %v464, 0.0
  %v721 = vmax.f32 %v465, 0.0
  %v722 = vmax.f32 %v466, 0.0
  %v723 = vmax.f32 %v467, 0.0
  %v724 = vmax.f32 %v468, 0.0
  %v725 = vmax.f32 %v469, 0.0
  %v726 = vmax.f32 %v470, 0.0
  %v727 = vmax.f32 %v471, 0.0
  %v728 = vmax.f32 %v472, 0.0
  %v729 = vmax.f32 %v473, 0.0
  %v730 = vmax.f32 %v474, 0.0
  %v731 = vmax.f32 %v475, 0.0
  %v732 = vmax.f32 %v476, 0.0
  %v733 = vmax.f32 %v477, 0.0
  %v734 = vmax.f32 %v478, 0.0
  %v735 = vmax.f32 %v479, 0.0
  %v736 = vmax.f32 %v480, 0.0
  %v737 = vmax.f32 %v481, 0.0
  %v738 = vmax.f32 %v482, 0.0
  %v739 = vmax.f32 %v483, 0.0
  %v740 = vmax.f32 %v484, 0.0
  %v741 = vmax.f32 %v485, 0.0
  %v742 = vmax.f32 %v486, 0.0
  %v743 = vmax.f32 %v487, 0.0
  %v744 = vmax.f32 %v488, 0.0
  %v745 = vmax.f32 %v489, 0.0
  %v746 = vmax.f32 %v490, 0.0
  %v747 = vmax.f32 %v491, 0.0
  %v748 = vmax.f32 %v492, 0.0
  %v749 = vmax.f32 %v493, 0.0
  %v750 = vmax.f32 %v494, 0.0
  %v751 = vmax.f32 %v495, 0.0
  %v752 = vmax.f32 %v496, 0.0
  %v753 = vmax.f32 %v497, 0.0
  %v754 = vmax.f32 %v498, 0.0
  %v755 = vmax.f32 %v499, 0.0
  %v756 = vmax.f32 %v500, 0.0
  %v757 = vmax.f32 %v501, 0.0
  %v758 = vmax.f32 %v502, 0.0
  %v759 = vmax.f32 %v503, 0.0
  %v760 = vmax.f32 %v504, 0.0
  %v761 = vmax.f32 %v505, 0.0
  %v762 = vmax.f32 %v506, 0.0
  %v763 = vmax.f32 %v507, 0.0
  %v764 = vmax.f32 %v508, 0.0
  %v765 = vmax.f32 %v509, 0.0
  %v766 = vmax.f32 %v510, 0.0
  %v767 = vmax.f32 %v511, 0.0
  %v768 = vmax.f32 %v512, 0.0
  %v769 = vmax.f32 %v513, 0.0
  %v770 = vmax.f32 %v514, 0.0
  %v771 = vmax.f32 %v515, 0.0
  %v772 = vmax.f32 %v516, 0.0
  %v773 = vmax.f32 %v517, 0.0
  %v774 = vmax.f32 %v518, 0.0
  %v775 = vmax.f32 %v519, 0.0
  %v776 = vmax.f32 %v520, 0.0
  %v777 = vmax.f32 %v521, 0.0
  %v778 = vmax.f32 %v522, 0.0
  %v779 = vmax.f32 %v523, 0.0
  %v780 = vmax.f32 %v524, 0.0
  %v781 = vmax.f32 %v525, 0.0
  %v782 = vmax.f32 %v526, 0.0
  %v783 = vmax.f32 %v527, 0.0
  %v784 = vmax.f32 %v528, 0.0
  %v785 = vmax.f32 %v529, 0.0
  %v786 = vmax.f32 %v530, 0.0
  %v787 = vmax.f32 %v531, 0.0
  %v788 = vmax.f32 %v532, 0.0
  %v789 = vmax.f32 %v533, 0.0
  %v790 = vmax.f32 %v534, 0.0
  %v791 = vmax.f32 %v535, 0.0
  %v792 = vmax.f32 %v536, 0.0
  %v793 = vmax.f32 %v537, 0.0
  %v794 = vmax.f32 %v538, 0.0
  %v795 = vmax.f32 %v539, 0.0
  %v796 = vmax.f32 %v540, 0.0
  %v797 = vmax.f32 %v541, 0.0
  %v798 = vmax.f32 %v542, 0.0
  %v799 = vmax.f32 %v543, 0.0
  %v800 = vmax.f32 %v544, 0.0
  %v801 = vmax.f32 %v545, 0.0
  %v802 = vmax.f32 %v546, 0.0
  %v803 = vmax.f32 %v547, 0.0
  %v804 = vmax.f32 %v548, 0.0
  %v805 = vmax.f32 %v549, 0.0
  %v806 = vmax.f32 %v550, 0.0
  %v807 = vmax.f32 %v551, 0.0
  %v808 = vmax.f32 %v552, 0.0
  %v809 = vmax.f32 %v553, 0.0
  %v810 = vmax.f32 %v554, 0.0
  %v811 = vmax.f32 %v555, 0.0
  %v812 = vmax.f32 %v556, 0.0
  %v813 = vmax.f32 %v557, 0.0
  %v814 = vmax.f32 %v558, 0.0
  %v815 = vmax.f32 %v559, 0.0
  %v816 = vmax.f32 %v560, 0.0
  %v817 = vmax.f32 %v561, 0.0
  %v818 = vmax.f32 %v562, 0.0
  %v819 = vmax.f32 %v563, 0.0
  %v820 = vmax.f32 %v564, 0.0
  %v821 = vmax.f32 %v565, 0.0
  %v822 = vmax.f32 %v566, 0.0
  %v823 = vmax.f32 %v567, 0.0
  %v824 = vmax.f32 %v568, 0.0
  %v825 = vmax.f32 %v569, 0.0
  %v826 = vmax.f32 %v570, 0.0
  %v827 = vmax.f32 %v571, 0.0
  %v828 = vmax.f32 %v572, 0.0
  %v829 = vmax.f32 %v573, 0.0
  %v830 = vmax.f32 %v574, 0.0
  %v831 = vmax.f32 %v575, 0.0
  %v832 = vmax.f32 %v576, 0.0
  %v833 = vmax.f32 %v577, 0.0
  %v834 = vmax.f32 %v578, 0.0
  %v835 = vmax.f32 %v579, 0.0
  %v836 = vmax.f32 %v580, 0.0
  %v837 = vmax.f32 %v581, 0.0
  %v838 = vmax.f32 %v582, 0.0
  %v839 = vmax.f32 %v583, 0.0
  %v840 = vmax.f32 %v584, 0.0
  %v841 = vmax.f32 %v585, 0.0
  %v842 = vmax.f32 %v586, 0.0
  %v843 = vmax.f32 %v587, 0.0
  %v844 = vmax.f32 %v588, 0.0
  %v845 = vmax.f32 %v589, 0.0
  %v846 = vmax.f32 %v590, 0.0
  %v847 = vmax.f32 %v591, 0.0
  %v848 = vmax.f32 %v592, 0.0
  %v849 = vmax.f32 %v593, 0.0
  %v850 = vmax.f32 %v594, 0.0
  %v851 = vmax.f32 %v595, 0.0
  %v852 = vmax.f32 %v596, 0.0
  %v853 = vmax.f32 %v597, 0.0
  %v854 = vmax.f32 %v598, 0.0
  %v855 = vmax.f32 %v599, 0.0
  %v856 = vmax.f32 %v600, 0.0
  %v857 = vmax.f32 %v601, 0.0
  %v858 = vmax.f32 %v602, 0.0
  %v859 = vmax.f32 %v603, 0.0
  %v860 = vmax.f32 %v604, 0.0
  %v861 = vmax.f32 %v605, 0.0
  %v862 = vmax.f32 %v606, 0.0
  %v863 = vmax.f32 %v607, 0.0
  %v864 = vmax.f32 %v608, 0.0
  %v865 = vmax.f32 %v609, 0.0
  %v866 = vmax.f32 %v610, 0.0
  %v867 = vmax.f32 %v611, 0.0
  %v868 = vmax.f32 %v612, 0.0
  %v869 = vmax.f32 %v613, 0.0
  %v870 = vmax.f32 %v614, 0.0
  %v871 = vmax.f32 %v615, 0.0
  %v872 = vmax.f32 %v616, 0.0
  %v873 = vmax.f32 %v617, 0.0
  %v874 = vmax.f32 %v618, 0.0
  %v875 = vmax.f32 %v619, 0.0
  %v876 = vmax.f32 %v620, 0.0
  %v877 = vmax.f32 %v621, 0.0
  %v878 = vmax.f32 %v622, 0.0
  %v879 = vmax.f32 %v623, 0.0
  %v880 = vmax.f32 %v624, 0.0
  %v881 = vmax.f32 %v625, 0.0
  %v882 = vmax.f32 %v626, 0.0
  %v883 = vmax.f32 %v627, 0.0
  %v884 = vmax.f32 %v628, 0.0
  %v885 = vmax.f32 %v629, 0.0
  %v886 = vmax.f32 %v630, 0.0
  %v887 = vmax.f32 %v631, 0.0
  %v888 = vmax.f32 %v632, 0.0
  %v889 = vmax.f32 %v633, 0.0
  %v890 = vmax.f32 %v634, 0.0
  %v891 = vmax.f32 %v635, 0.0
  %v892 = vmax.f32 %v636, 0.0
  %v893 = vmax.f32 %v637, 0.0
  %v894 = vmax.f32 %v638, 0.0
  %v895 = vmax.f32 %v639, 0.0
  %v896 = vmax.f32 %v640, 0.0
  %v897 = vmax.f32 %v641, 0.0
  %v898 = vmax.f32 %v642, 0.0
  %v899 = vmax.f32 %v643, 0.0
  %v900 = vmax.f32 %v644, 0.0
  %v901 = vmax.f32 %v645, 0.0
  %v902 = vmax.f32 %v646, 0.0
  %v903 = vmax.f32 %v647, 0.0
  %v904 = vmax.f32 %v648, 0.0
  %v905 = vmax.f32 %v649, 0.0
  %v906 = vmax.f32 %v650, 0.0
  %v907 = vmax.f32 %v651, 0.0
  %v908 = vmax.f32 %v652, 0.0
  %v909 = vmax.f32 %v653, 0.0
  %v910 = vmax.f32 %v654, 0.0
  %v911 = vmax.f32 %v655, 0.0
  %v912 = vmax.f32 %v656, 0.0
  %v913 = vmax.f32 %v657, 0.0
  %v914 = vmax.f32 %v658, 0.0
  %v915 = vmax.f32 %v659, 0.0
  %v916 = vmax.f32 %v660, 0.0
  %v917 = vmax.f32 %v661, 0.0
  %v918 = vmax.f32 %v662, 0.0
  %v919 = vmax.f32 %v663, 0.0
  %v920 = vmax.f32 %v664, 0.0
  %v921 = vmax.f32 %v665, 0.0
  %v922 = vmax.f32 %v666, 0.0
  %v923 = vmax.f32 %v667, 0.0
  %v924 = vmax.f32 %v668, 0.0
  %v925 = vmax.f32 %v669, 0.0
  %v926 = vmax.f32 %v670, 0.0
  %v927 = vmax.f32 %v671, 0.0
  %v928 = vmax.f32 %v672, 0.0
  %v929 = vmax.f32 %v673, 0.0
  %v930 = vmax.f32 %v674, 0.0
  %v931 = vmax.f32 %v675, 0.0
  %v932 = vmax.f32 %v676, 0.0
  %v933 = vmax.f32 %v677, 0.0
  %v934 = vmax.f32 %v678, 0.0
  %v935 = vmax.f32 %v679, 0.0
  %v936 = vmax.f32 %v680, 0.0
  %v937 = vmax.f32 %v681, 0.0
  %v938 = vmax.f32 %v682, 0.0
  %v939 = vmax.f32 %v683, 0.0
  %v940 = vmax.f32 %v684, 0.0
  %v941 = vmax.f32 %v685, 0.0
  %v942 = vmax.f32 %v686, 0.0
  %v943 = vmax.f32 %v687, 0.0
  %v944 = vmax.f32 %v688, 0.0
  %v945 = vmax.f32 %v689, 0.0
  %v946 = vmax.f32 %v690, 0.0
  %v947 = vmax.f32 %v691, 0.0
  %v948 = vmax.f32 %v692, 0.0
  %v949 = vmax.f32 %v693, 0.0
  %v950 = vmax.f32 %v694, 0.0
  %v951 = vmax.f32 %v695, 0.0
  %v952 = vpack.c.bf16 %v712, %v696
  %v953 = vpack.c.bf16 %v713, %v697
  %v954 = vpack.c.bf16 %v714, %v698
  %v955 = vpack.c.bf16 %v715, %v699
  %v956 = vpack.c.bf16 %v716, %v700
  %v957 = vpack.c.bf16 %v717, %v701
  %v958 = vpack.c.bf16 %v718, %v702
  %v959 = vpack.c.bf16 %v719, %v703
  %v960 = vpack.c.bf16 %v720, %v704
  %v961 = vpack.c.bf16 %v721, %v705
  %v962 = vpack.c.bf16 %v722, %v706
  %v963 = vpack.c.bf16 %v723, %v707
  %v964 = vpack.c.bf16 %v724, %v708
  %v965 = vpack.c.bf16 %v725, %v709
  %v966 = vpack.c.bf16 %v726, %v710
  %v967 = vpack.c.bf16 %v727, %v711
  %v968 = vpack.c.bf16 %v744, %v728
  %v969 = vpack.c.bf16 %v745, %v729
  %v970 = vpack.c.bf16 %v746, %v730
  %v971 = vpack.c.bf16 %v747, %v731
  %v972 = vpack.c.bf16 %v748, %v732
  %v973 = vpack.c.bf16 %v749, %v733
  %v974 = vpack.c.bf16 %v750, %v734
  %v975 = vpack.c.bf16 %v751, %v735
  %v976 = vpack.c.bf16 %v752, %v736
  %v977 = vpack.c.bf16 %v753, %v737
  %v978 = vpack.c.bf16 %v754, %v738
  %v979 = vpack.c.bf16 %v755, %v739
  %v980 = vpack.c.bf16 %v756, %v740
  %v981 = vpack.c.bf16 %v757, %v741
  %v982 = vpack.c.bf16 %v758, %v742
  %v983 = vpack.c.bf16 %v759, %v743
  %v984 = vpack.c.bf16 %v776, %v760
  %v985 = vpack.c.bf16 %v777, %v761
  %v986 = vpack.c.bf16 %v778, %v762
  %v987 = vpack.c.bf16 %v779, %v763
  %v988 = vpack.c.bf16 %v780, %v764
  %v989 = vpack.c.bf16 %v781, %v765
  %v990 = vpack.c.bf16 %v782, %v766
  %v991 = vpack.c.bf16 %v783, %v767
  %v992 = vpack.c.bf16 %v784, %v768
  %v993 = vpack.c.bf16 %v785, %v769
  %v994 = vpack.c.bf16 %v786, %v770
  %v995 = vpack.c.bf16 %v787, %v771
  %v996 = vpack.c.bf16 %v788, %v772
  %v997 = vpack.c.bf16 %v789, %v773
  %v998 = vpack.c.bf16 %v790, %v774
  %v999 = vpack.c.bf16 %v791, %v775
  %v1000 = vpack.c.bf16 %v808, %v792
  %v1001 = vpack.c.bf16 %v809, %v793
  %v1002 = vpack.c.bf16 %v810, %v794
  %v1003 = vpack.c.bf16 %v811, %v795
  %v1004 = vpack.c.bf16 %v812, %v796
  %v1005 = vpack.c.bf16 %v813, %v797
  %v1006 = vpack.c.bf16 %v814, %v798
  %v1007 = vpack.c.bf16 %v815, %v799
  %v1008 = vpack.c.bf16 %v816, %v800
  %v1009 = vpack.c.bf16 %v817, %v801
  %v1010 = vpack.c.bf16 %v818, %v802
  %v1011 = vpack.c.bf16 %v819, %v803
  %v1012 = vpack.c.bf16 %v820, %v804
  %v1013 = vpack.c.bf16 %v821, %v805
  %v1014 = vpack.c.bf16 %v822, %v806
  %v1015 = vpack.c.bf16 %v823, %v807
  %v1016 = vpack.c.bf16 %v840, %v824
  %v1017 = vpack.c.bf16 %v841, %v825
  %v1018 = vpack.c.bf16 %v842, %v826
  %v1019 = vpack.c.bf16 %v843, %v827
  %v1020 = vpack.c.bf16 %v844, %v828
  %v1021 = vpack.c.bf16 %v845, %v829
  %v1022 = vpack.c.bf16 %v846, %v830
  %v1023 = vpack.c.bf16 %v847, %v831
  %v1024 = vpack.c.bf16 %v848, %v832
  %v1025 = vpack.c.bf16 %v849, %v833
  %v1026 = vpack.c.bf16 %v850, %v834
  %v1027 = vpack.c.bf16 %v851, %v835
  %v1028 = vpack.c.bf16 %v852, %v836
  %v1029 = vpack.c.bf16 %v853, %v837
  %v1030 = vpack.c.bf16 %v854, %v838
  %v1031 = vpack.c.bf16 %v855, %v839
  %v1032 = vpack.c.bf16 %v872, %v856
  %v1033 = vpack.c.bf16 %v873, %v857
  %v1034 = vpack.c.bf16 %v874, %v858
  %v1035 = vpack.c.bf16 %v875, %v859
  %v1036 = vpack.c.bf16 %v876, %v860
  %v1037 = vpack.c.bf16 %v877, %v861
  %v1038 = vpack.c.bf16 %v878, %v862
  %v1039 = vpack.c.bf16 %v879, %v863
  %v1040 = vpack.c.bf16 %v880, %v864
  %v1041 = vpack.c.bf16 %v881, %v865
  %v1042 = vpack.c.bf16 %v882, %v866
  %v1043 = vpack.c.bf16 %v883, %v867
  %v1044 = vpack.c.bf16 %v884, %v868
  %v1045 = vpack.c.bf16 %v885, %v869
  %v1046 = vpack.c.bf16 %v886, %v870
  %v1047 = vpack.c.bf16 %v887, %v871
  %v1048 = vpack.c.bf16 %v904, %v888
  %v1049 = vpack.c.bf16 %v905, %v889
  %v1050 = vpack.c.bf16 %v906, %v890
  %v1051 = vpack.c.bf16 %v907, %v891
  %v1052 = vpack.c.bf16 %v908, %v892
  %v1053 = vpack.c.bf16 %v909, %v893
  %v1054 = vpack.c.bf16 %v910, %v894
  %v1055 = vpack.c.bf16 %v911, %v895
  %v1056 = vpack.c.bf16 %v912, %v896
  %v1057 = vpack.c.bf16 %v913, %v897
  %v1058 = vpack.c.bf16 %v914, %v898
  %v1059 = vpack.c.bf16 %v915, %v899
  %v1060 = vpack.c.bf16 %v916, %v900
  %v1061 = vpack.c.bf16 %v917, %v901
  %v1062 = vpack.c.bf16 %v918, %v902
  %v1063 = vpack.c.bf16 %v919, %v903
  %v1064 = vpack.c.bf16 %v936, %v920
  %v1065 = vpack.c.bf16 %v937, %v921
  %v1066 = vpack.c.bf16 %v938, %v922
  %v1067 = vpack.c.bf16 %v939, %v923
  %v1068 = vpack.c.bf16 %v940, %v924
  %v1069 = vpack.c.bf16 %v941, %v925
  %v1070 = vpack.c.bf16 %v942, %v926
  %v1071 = vpack.c.bf16 %v943, %v927
  %v1072 = vpack.c.bf16 %v944, %v928
  %v1073 = vpack.c.bf16 %v945, %v929
  %v1074 = vpack.c.bf16 %v946, %v930
  %v1075 = vpack.c.bf16 %v947, %v931
  %v1076 = vpack.c.bf16 %v948, %v932
  %v1077 = vpack.c.bf16 %v949, %v933
  %v1078 = vpack.c.bf16 %v950, %v934
  %v1079 = vpack.c.bf16 %v951, %v935
  %v1080 = vld [vmem:[%s2] sm:$0xf]
  %v1081 = vld [vmem:[%s2 + $0x4] sm:$0xf]
  %v1082 = vld [vmem:[%s2 + $0x8] sm:$0xf]
  %v1083 = vld [vmem:[%s2 + $0xc] sm:$0xf]
  %v1084 = vld [vmem:[%s2 + $0x10] sm:$0xf]
  %v1085 = vld [vmem:[%s2 + $0x14] sm:$0xf]
  %v1086 = vld [vmem:[%s2 + $0x18] sm:$0xf]
  %v1087 = vld [vmem:[%s2 + $0x1c] sm:$0xf]
  %v1088 = vld [vmem:[%s2 + $0x20] sm:$0xf]
  %v1089 = vld [vmem:[%s2 + $0x24] sm:$0xf]
  %v1090 = vld [vmem:[%s2 + $0x28] sm:$0xf]
  %v1091 = vld [vmem:[%s2 + $0x2c] sm:$0xf]
  %v1092 = vld [vmem:[%s2 + $0x30] sm:$0xf]
  %v1093 = vld [vmem:[%s2 + $0x34] sm:$0xf]
  %v1094 = vld [vmem:[%s2 + $0x38] sm:$0xf]
  %v1095 = vld [vmem:[%s2 + $0x3c] sm:$0xf]
  %v1096 = vld [vmem:[%s2 + $0x40] sm:$0xf]
  %v1097 = vld [vmem:[%s2 + $0x44] sm:$0xf]
  %v1098 = vld [vmem:[%s2 + $0x48] sm:$0xf]
  %v1099 = vld [vmem:[%s2 + $0x4c] sm:$0xf]
  %v1100 = vld [vmem:[%s2 + $0x50] sm:$0xf]
  %v1101 = vld [vmem:[%s2 + $0x54] sm:$0xf]
  %v1102 = vld [vmem:[%s2 + $0x58] sm:$0xf]
  %v1103 = vld [vmem:[%s2 + $0x5c] sm:$0xf]
  %v1104 = vld [vmem:[%s2 + $0x60] sm:$0xf]
  %v1105 = vld [vmem:[%s2 + $0x64] sm:$0xf]
  %v1106 = vld [vmem:[%s2 + $0x68] sm:$0xf]
  %v1107 = vld [vmem:[%s2 + $0x6c] sm:$0xf]
  %v1108 = vld [vmem:[%s2 + $0x70] sm:$0xf]
  %v1109 = vld [vmem:[%s2 + $0x74] sm:$0xf]
  %v1110 = vld [vmem:[%s2 + $0x78] sm:$0xf]
  %v1111 = vld [vmem:[%s2 + $0x7c] sm:$0xf]
  %v1112 = vld [vmem:[%s2 + $0x80] sm:$0xf]
  %v1113 = vld [vmem:[%s2 + $0x84] sm:$0xf]
  %v1114 = vld [vmem:[%s2 + $0x88] sm:$0xf]
  %v1115 = vld [vmem:[%s2 + $0x8c] sm:$0xf]
  %v1116 = vld [vmem:[%s2 + $0x90] sm:$0xf]
  %v1117 = vld [vmem:[%s2 + $0x94] sm:$0xf]
  %v1118 = vld [vmem:[%s2 + $0x98] sm:$0xf]
  %v1119 = vld [vmem:[%s2 + $0x9c] sm:$0xf]
  %v1120 = vld [vmem:[%s2 + $0xa0] sm:$0xf]
  %v1121 = vld [vmem:[%s2 + $0xa4] sm:$0xf]
  %v1122 = vld [vmem:[%s2 + $0xa8] sm:$0xf]
  %v1123 = vld [vmem:[%s2 + $0xac] sm:$0xf]
  %v1124 = vld [vmem:[%s2 + $0xb0] sm:$0xf]
  %v1125 = vld [vmem:[%s2 + $0xb4] sm:$0xf]
  %v1126 = vld [vmem:[%s2 + $0xb8] sm:$0xf]
  %v1127 = vld [vmem:[%s2 + $0xbc] sm:$0xf]
  %v1128 = vld [vmem:[%s2 + $0xc0] sm:$0xf]
  %v1129 = vld [vmem:[%s2 + $0xc4] sm:$0xf]
  %v1130 = vld [vmem:[%s2 + $0xc8] sm:$0xf]
  %v1131 = vld [vmem:[%s2 + $0xcc] sm:$0xf]
  %v1132 = vld [vmem:[%s2 + $0xd0] sm:$0xf]
  %v1133 = vld [vmem:[%s2 + $0xd4] sm:$0xf]
  %v1134 = vld [vmem:[%s2 + $0xd8] sm:$0xf]
  %v1135 = vld [vmem:[%s2 + $0xdc] sm:$0xf]
  %v1136 = vld [vmem:[%s2 + $0xe0] sm:$0xf]
  %v1137 = vld [vmem:[%s2 + $0xe4] sm:$0xf]
  %v1138 = vld [vmem:[%s2 + $0xe8] sm:$0xf]
  %v1139 = vld [vmem:[%s2 + $0xec] sm:$0xf]
  %v1140 = vld [vmem:[%s2 + $0xf0] sm:$0xf]
  %v1141 = vld [vmem:[%s2 + $0xf4] sm:$0xf]
  %v1142 = vld [vmem:[%s2 + $0xf8] sm:$0xf]
  %v1143 = vld [vmem:[%s2 + $0xfc] sm:$0xf]
  %v1144 = vld [vmem:[%s2 + $0x100] sm:$0xf]
  %v1145 = vld [vmem:[%s2 + $0x104] sm:$0xf]
  %v1146 = vld [vmem:[%s2 + $0x108] sm:$0xf]
  %v1147 = vld [vmem:[%s2 + $0x10c] sm:$0xf]
  %v1148 = vld [vmem:[%s2 + $0x110] sm:$0xf]
  %v1149 = vld [vmem:[%s2 + $0x114] sm:$0xf]
  %v1150 = vld [vmem:[%s2 + $0x118] sm:$0xf]
  %v1151 = vld [vmem:[%s2 + $0x11c] sm:$0xf]
  %v1152 = vld [vmem:[%s2 + $0x120] sm:$0xf]
  %v1153 = vld [vmem:[%s2 + $0x124] sm:$0xf]
  %v1154 = vld [vmem:[%s2 + $0x128] sm:$0xf]
  %v1155 = vld [vmem:[%s2 + $0x12c] sm:$0xf]
  %v1156 = vld [vmem:[%s2 + $0x130] sm:$0xf]
  %v1157 = vld [vmem:[%s2 + $0x134] sm:$0xf]
  %v1158 = vld [vmem:[%s2 + $0x138] sm:$0xf]
  %v1159 = vld [vmem:[%s2 + $0x13c] sm:$0xf]
  %v1160 = vld [vmem:[%s2 + $0x140] sm:$0xf]
  %v1161 = vld [vmem:[%s2 + $0x144] sm:$0xf]
  %v1162 = vld [vmem:[%s2 + $0x148] sm:$0xf]
  %v1163 = vld [vmem:[%s2 + $0x14c] sm:$0xf]
  %v1164 = vld [vmem:[%s2 + $0x150] sm:$0xf]
  %v1165 = vld [vmem:[%s2 + $0x154] sm:$0xf]
  %v1166 = vld [vmem:[%s2 + $0x158] sm:$0xf]
  %v1167 = vld [vmem:[%s2 + $0x15c] sm:$0xf]
  %v1168 = vld [vmem:[%s2 + $0x160] sm:$0xf]
  %v1169 = vld [vmem:[%s2 + $0x164] sm:$0xf]
  %v1170 = vld [vmem:[%s2 + $0x168] sm:$0xf]
  %v1171 = vld [vmem:[%s2 + $0x16c] sm:$0xf]
  %v1172 = vld [vmem:[%s2 + $0x170] sm:$0xf]
  %v1173 = vld [vmem:[%s2 + $0x174] sm:$0xf]
  %v1174 = vld [vmem:[%s2 + $0x178] sm:$0xf]
  %v1175 = vld [vmem:[%s2 + $0x17c] sm:$0xf]
  %v1176 = vld [vmem:[%s2 + $0x180] sm:$0xf]
  %v1177 = vld [vmem:[%s2 + $0x184] sm:$0xf]
  %v1178 = vld [vmem:[%s2 + $0x188] sm:$0xf]
  %v1179 = vld [vmem:[%s2 + $0x18c] sm:$0xf]
  %v1180 = vld [vmem:[%s2 + $0x190] sm:$0xf]
  %v1181 = vld [vmem:[%s2 + $0x194] sm:$0xf]
  %v1182 = vld [vmem:[%s2 + $0x198] sm:$0xf]
  %v1183 = vld [vmem:[%s2 + $0x19c] sm:$0xf]
  %v1184 = vld [vmem:[%s2 + $0x1a0] sm:$0xf]
  %v1185 = vld [vmem:[%s2 + $0x1a4] sm:$0xf]
  %v1186 = vld [vmem:[%s2 + $0x1a8] sm:$0xf]
  %v1187 = vld [vmem:[%s2 + $0x1ac] sm:$0xf]
  %v1188 = vld [vmem:[%s2 + $0x1b0] sm:$0xf]
  %v1189 = vld [vmem:[%s2 + $0x1b4] sm:$0xf]
  %v1190 = vld [vmem:[%s2 + $0x1b8] sm:$0xf]
  %v1191 = vld [vmem:[%s2 + $0x1bc] sm:$0xf]
  %v1192 = vld [vmem:[%s2 + $0x1c0] sm:$0xf]
  %v1193 = vld [vmem:[%s2 + $0x1c4] sm:$0xf]
  %v1194 = vld [vmem:[%s2 + $0x1c8] sm:$0xf]
  %v1195 = vld [vmem:[%s2 + $0x1cc] sm:$0xf]
  %v1196 = vld [vmem:[%s2 + $0x1d0] sm:$0xf]
  %v1197 = vld [vmem:[%s2 + $0x1d4] sm:$0xf]
  %v1198 = vld [vmem:[%s2 + $0x1d8] sm:$0xf]
  %v1199 = vld [vmem:[%s2 + $0x1dc] sm:$0xf]
  %v1200 = vld [vmem:[%s2 + $0x1e0] sm:$0xf]
  %v1201 = vld [vmem:[%s2 + $0x1e4] sm:$0xf]
  %v1202 = vld [vmem:[%s2 + $0x1e8] sm:$0xf]
  %v1203 = vld [vmem:[%s2 + $0x1ec] sm:$0xf]
  %v1204 = vld [vmem:[%s2 + $0x1f0] sm:$0xf]
  %v1205 = vld [vmem:[%s2 + $0x1f4] sm:$0xf]
  %v1206 = vld [vmem:[%s2 + $0x1f8] sm:$0xf]
  %v1207 = vld [vmem:[%s2 + $0x1fc] sm:$0xf]
  %v1208 = vld [vmem:[%s2 + $0x200] sm:$0xf]
  %v1209 = vld [vmem:[%s2 + $0x204] sm:$0xf]
  %v1210 = vld [vmem:[%s2 + $0x208] sm:$0xf]
  %v1211 = vld [vmem:[%s2 + $0x20c] sm:$0xf]
  %v1212 = vld [vmem:[%s2 + $0x210] sm:$0xf]
  %v1213 = vld [vmem:[%s2 + $0x214] sm:$0xf]
  %v1214 = vld [vmem:[%s2 + $0x218] sm:$0xf]
  %v1215 = vld [vmem:[%s2 + $0x21c] sm:$0xf]
  %v1216 = vld [vmem:[%s2 + $0x220] sm:$0xf]
  %v1217 = vld [vmem:[%s2 + $0x224] sm:$0xf]
  %v1218 = vld [vmem:[%s2 + $0x228] sm:$0xf]
  %v1219 = vld [vmem:[%s2 + $0x22c] sm:$0xf]
  %v1220 = vld [vmem:[%s2 + $0x230] sm:$0xf]
  %v1221 = vld [vmem:[%s2 + $0x234] sm:$0xf]
  %v1222 = vld [vmem:[%s2 + $0x238] sm:$0xf]
  %v1223 = vld [vmem:[%s2 + $0x23c] sm:$0xf]
  %v1224 = vld [vmem:[%s2 + $0x240] sm:$0xf]
  %v1225 = vld [vmem:[%s2 + $0x244] sm:$0xf]
  %v1226 = vld [vmem:[%s2 + $0x248] sm:$0xf]
  %v1227 = vld [vmem:[%s2 + $0x24c] sm:$0xf]
  %v1228 = vld [vmem:[%s2 + $0x250] sm:$0xf]
  %v1229 = vld [vmem:[%s2 + $0x254] sm:$0xf]
  %v1230 = vld [vmem:[%s2 + $0x258] sm:$0xf]
  %v1231 = vld [vmem:[%s2 + $0x25c] sm:$0xf]
  %v1232 = vld [vmem:[%s2 + $0x260] sm:$0xf]
  %v1233 = vld [vmem:[%s2 + $0x264] sm:$0xf]
  %v1234 = vld [vmem:[%s2 + $0x268] sm:$0xf]
  %v1235 = vld [vmem:[%s2 + $0x26c] sm:$0xf]
  %v1236 = vld [vmem:[%s2 + $0x270] sm:$0xf]
  %v1237 = vld [vmem:[%s2 + $0x274] sm:$0xf]
  %v1238 = vld [vmem:[%s2 + $0x278] sm:$0xf]
  %v1239 = vld [vmem:[%s2 + $0x27c] sm:$0xf]
  %v1240 = vld [vmem:[%s2 + $0x280] sm:$0xf]
  %v1241 = vld [vmem:[%s2 + $0x284] sm:$0xf]
  %v1242 = vld [vmem:[%s2 + $0x288] sm:$0xf]
  %v1243 = vld [vmem:[%s2 + $0x28c] sm:$0xf]
  %v1244 = vld [vmem:[%s2 + $0x290] sm:$0xf]
  %v1245 = vld [vmem:[%s2 + $0x294] sm:$0xf]
  %v1246 = vld [vmem:[%s2 + $0x298] sm:$0xf]
  %v1247 = vld [vmem:[%s2 + $0x29c] sm:$0xf]
  %v1248 = vld [vmem:[%s2 + $0x2a0] sm:$0xf]
  %v1249 = vld [vmem:[%s2 + $0x2a4] sm:$0xf]
  %v1250 = vld [vmem:[%s2 + $0x2a8] sm:$0xf]
  %v1251 = vld [vmem:[%s2 + $0x2ac] sm:$0xf]
  %v1252 = vld [vmem:[%s2 + $0x2b0] sm:$0xf]
  %v1253 = vld [vmem:[%s2 + $0x2b4] sm:$0xf]
  %v1254 = vld [vmem:[%s2 + $0x2b8] sm:$0xf]
  %v1255 = vld [vmem:[%s2 + $0x2bc] sm:$0xf]
  %v1256 = vld [vmem:[%s2 + $0x2c0] sm:$0xf]
  %v1257 = vld [vmem:[%s2 + $0x2c4] sm:$0xf]
  %v1258 = vld [vmem:[%s2 + $0x2c8] sm:$0xf]
  %v1259 = vld [vmem:[%s2 + $0x2cc] sm:$0xf]
  %v1260 = vld [vmem:[%s2 + $0x2d0] sm:$0xf]
  %v1261 = vld [vmem:[%s2 + $0x2d4] sm:$0xf]
  %v1262 = vld [vmem:[%s2 + $0x2d8] sm:$0xf]
  %v1263 = vld [vmem:[%s2 + $0x2dc] sm:$0xf]
  %v1264 = vld [vmem:[%s2 + $0x2e0] sm:$0xf]
  %v1265 = vld [vmem:[%s2 + $0x2e4] sm:$0xf]
  %v1266 = vld [vmem:[%s2 + $0x2e8] sm:$0xf]
  %v1267 = vld [vmem:[%s2 + $0x2ec] sm:$0xf]
  %v1268 = vld [vmem:[%s2 + $0x2f0] sm:$0xf]
  %v1269 = vld [vmem:[%s2 + $0x2f4] sm:$0xf]
  %v1270 = vld [vmem:[%s2 + $0x2f8] sm:$0xf]
  %v1271 = vld [vmem:[%s2 + $0x2fc] sm:$0xf]
  %v1272 = vld [vmem:[%s2 + $0x300] sm:$0xf]
  %v1273 = vld [vmem:[%s2 + $0x304] sm:$0xf]
  %v1274 = vld [vmem:[%s2 + $0x308] sm:$0xf]
  %v1275 = vld [vmem:[%s2 + $0x30c] sm:$0xf]
  %v1276 = vld [vmem:[%s2 + $0x310] sm:$0xf]
  %v1277 = vld [vmem:[%s2 + $0x314] sm:$0xf]
  %v1278 = vld [vmem:[%s2 + $0x318] sm:$0xf]
  %v1279 = vld [vmem:[%s2 + $0x31c] sm:$0xf]
  %v1280 = vld [vmem:[%s2 + $0x320] sm:$0xf]
  %v1281 = vld [vmem:[%s2 + $0x324] sm:$0xf]
  %v1282 = vld [vmem:[%s2 + $0x328] sm:$0xf]
  %v1283 = vld [vmem:[%s2 + $0x32c] sm:$0xf]
  %v1284 = vld [vmem:[%s2 + $0x330] sm:$0xf]
  %v1285 = vld [vmem:[%s2 + $0x334] sm:$0xf]
  %v1286 = vld [vmem:[%s2 + $0x338] sm:$0xf]
  %v1287 = vld [vmem:[%s2 + $0x33c] sm:$0xf]
  %v1288 = vld [vmem:[%s2 + $0x340] sm:$0xf]
  %v1289 = vld [vmem:[%s2 + $0x344] sm:$0xf]
  %v1290 = vld [vmem:[%s2 + $0x348] sm:$0xf]
  %v1291 = vld [vmem:[%s2 + $0x34c] sm:$0xf]
  %v1292 = vld [vmem:[%s2 + $0x350] sm:$0xf]
  %v1293 = vld [vmem:[%s2 + $0x354] sm:$0xf]
  %v1294 = vld [vmem:[%s2 + $0x358] sm:$0xf]
  %v1295 = vld [vmem:[%s2 + $0x35c] sm:$0xf]
  %v1296 = vld [vmem:[%s2 + $0x360] sm:$0xf]
  %v1297 = vld [vmem:[%s2 + $0x364] sm:$0xf]
  %v1298 = vld [vmem:[%s2 + $0x368] sm:$0xf]
  %v1299 = vld [vmem:[%s2 + $0x36c] sm:$0xf]
  %v1300 = vld [vmem:[%s2 + $0x370] sm:$0xf]
  %v1301 = vld [vmem:[%s2 + $0x374] sm:$0xf]
  %v1302 = vld [vmem:[%s2 + $0x378] sm:$0xf]
  %v1303 = vld [vmem:[%s2 + $0x37c] sm:$0xf]
  %v1304 = vld [vmem:[%s2 + $0x380] sm:$0xf]
  %v1305 = vld [vmem:[%s2 + $0x384] sm:$0xf]
  %v1306 = vld [vmem:[%s2 + $0x388] sm:$0xf]
  %v1307 = vld [vmem:[%s2 + $0x38c] sm:$0xf]
  %v1308 = vld [vmem:[%s2 + $0x390] sm:$0xf]
  %v1309 = vld [vmem:[%s2 + $0x394] sm:$0xf]
  %v1310 = vld [vmem:[%s2 + $0x398] sm:$0xf]
  %v1311 = vld [vmem:[%s2 + $0x39c] sm:$0xf]
  %v1312 = vld [vmem:[%s2 + $0x3a0] sm:$0xf]
  %v1313 = vld [vmem:[%s2 + $0x3a4] sm:$0xf]
  %v1314 = vld [vmem:[%s2 + $0x3a8] sm:$0xf]
  %v1315 = vld [vmem:[%s2 + $0x3ac] sm:$0xf]
  %v1316 = vld [vmem:[%s2 + $0x3b0] sm:$0xf]
  %v1317 = vld [vmem:[%s2 + $0x3b4] sm:$0xf]
  %v1318 = vld [vmem:[%s2 + $0x3b8] sm:$0xf]
  %v1319 = vld [vmem:[%s2 + $0x3bc] sm:$0xf]
  %v1320 = vld [vmem:[%s2 + $0x3c0] sm:$0xf]
  %v1321 = vld [vmem:[%s2 + $0x3c4] sm:$0xf]
  %v1322 = vld [vmem:[%s2 + $0x3c8] sm:$0xf]
  %v1323 = vld [vmem:[%s2 + $0x3cc] sm:$0xf]
  %v1324 = vld [vmem:[%s2 + $0x3d0] sm:$0xf]
  %v1325 = vld [vmem:[%s2 + $0x3d4] sm:$0xf]
  %v1326 = vld [vmem:[%s2 + $0x3d8] sm:$0xf]
  %v1327 = vld [vmem:[%s2 + $0x3dc] sm:$0xf]
  %v1328 = vld [vmem:[%s2 + $0x3e0] sm:$0xf]
  %v1329 = vld [vmem:[%s2 + $0x3e4] sm:$0xf]
  %v1330 = vld [vmem:[%s2 + $0x3e8] sm:$0xf]
  %v1331 = vld [vmem:[%s2 + $0x3ec] sm:$0xf]
  %v1332 = vld [vmem:[%s2 + $0x3f0] sm:$0xf]
  %v1333 = vld [vmem:[%s2 + $0x3f4] sm:$0xf]
  %v1334 = vld [vmem:[%s2 + $0x3f8] sm:$0xf]
  %v1335 = vld [vmem:[%s2 + $0x3fc] sm:$0xf]
  %v1336 = vld [vmem:[%s3] sm:$0x1]
  %v1338 = vperm.slane %v1336, 0
  %v1596 = vunpack.c.l.b16 %v1080
  %v1597 = vunpack.c.l.b16 %v1081
  %v1598 = vunpack.c.l.b16 %v1082
  %v1599 = vunpack.c.l.b16 %v1083
  %v1600 = vunpack.c.l.b16 %v1084
  %v1601 = vunpack.c.l.b16 %v1085
  %v1602 = vunpack.c.l.b16 %v1086
  %v1603 = vunpack.c.l.b16 %v1087
  %v1604 = vunpack.c.l.b16 %v1088
  %v1605 = vunpack.c.l.b16 %v1089
  %v1606 = vunpack.c.l.b16 %v1090
  %v1607 = vunpack.c.l.b16 %v1091
  %v1608 = vunpack.c.l.b16 %v1092
  %v1609 = vunpack.c.l.b16 %v1093
  %v1610 = vunpack.c.l.b16 %v1094
  %v1611 = vunpack.c.l.b16 %v1095
  %v1612 = vunpack.c.l.b16 %v1096
  %v1613 = vunpack.c.l.b16 %v1097
  %v1614 = vunpack.c.l.b16 %v1098
  %v1615 = vunpack.c.l.b16 %v1099
  %v1616 = vunpack.c.l.b16 %v1100
  %v1617 = vunpack.c.l.b16 %v1101
  %v1618 = vunpack.c.l.b16 %v1102
  %v1619 = vunpack.c.l.b16 %v1103
  %v1620 = vunpack.c.l.b16 %v1104
  %v1621 = vunpack.c.l.b16 %v1105
  %v1622 = vunpack.c.l.b16 %v1106
  %v1623 = vunpack.c.l.b16 %v1107
  %v1624 = vunpack.c.l.b16 %v1108
  %v1625 = vunpack.c.l.b16 %v1109
  %v1626 = vunpack.c.l.b16 %v1110
  %v1627 = vunpack.c.l.b16 %v1111
  %v1628 = vunpack.c.l.b16 %v1112
  %v1629 = vunpack.c.l.b16 %v1113
  %v1630 = vunpack.c.l.b16 %v1114
  %v1631 = vunpack.c.l.b16 %v1115
  %v1632 = vunpack.c.l.b16 %v1116
  %v1633 = vunpack.c.l.b16 %v1117
  %v1634 = vunpack.c.l.b16 %v1118
  %v1635 = vunpack.c.l.b16 %v1119
  %v1636 = vunpack.c.l.b16 %v1120
  %v1637 = vunpack.c.l.b16 %v1121
  %v1638 = vunpack.c.l.b16 %v1122
  %v1639 = vunpack.c.l.b16 %v1123
  %v1640 = vunpack.c.l.b16 %v1124
  %v1641 = vunpack.c.l.b16 %v1125
  %v1642 = vunpack.c.l.b16 %v1126
  %v1643 = vunpack.c.l.b16 %v1127
  %v1644 = vunpack.c.l.b16 %v1128
  %v1645 = vunpack.c.l.b16 %v1129
  %v1646 = vunpack.c.l.b16 %v1130
  %v1647 = vunpack.c.l.b16 %v1131
  %v1648 = vunpack.c.l.b16 %v1132
  %v1649 = vunpack.c.l.b16 %v1133
  %v1650 = vunpack.c.l.b16 %v1134
  %v1651 = vunpack.c.l.b16 %v1135
  %v1652 = vunpack.c.l.b16 %v1136
  %v1653 = vunpack.c.l.b16 %v1137
  %v1654 = vunpack.c.l.b16 %v1138
  %v1655 = vunpack.c.l.b16 %v1139
  %v1656 = vunpack.c.l.b16 %v1140
  %v1657 = vunpack.c.l.b16 %v1141
  %v1658 = vunpack.c.l.b16 %v1142
  %v1659 = vunpack.c.l.b16 %v1143
  %v1660 = vunpack.c.l.b16 %v1144
  %v1661 = vunpack.c.l.b16 %v1145
  %v1662 = vunpack.c.l.b16 %v1146
  %v1663 = vunpack.c.l.b16 %v1147
  %v1664 = vunpack.c.l.b16 %v1148
  %v1665 = vunpack.c.l.b16 %v1149
  %v1666 = vunpack.c.l.b16 %v1150
  %v1667 = vunpack.c.l.b16 %v1151
  %v1668 = vunpack.c.l.b16 %v1152
  %v1669 = vunpack.c.l.b16 %v1153
  %v1670 = vunpack.c.l.b16 %v1154
  %v1671 = vunpack.c.l.b16 %v1155
  %v1672 = vunpack.c.l.b16 %v1156
  %v1673 = vunpack.c.l.b16 %v1157
  %v1674 = vunpack.c.l.b16 %v1158
  %v1675 = vunpack.c.l.b16 %v1159
  %v1676 = vunpack.c.l.b16 %v1160
  %v1677 = vunpack.c.l.b16 %v1161
  %v1678 = vunpack.c.l.b16 %v1162
  %v1679 = vunpack.c.l.b16 %v1163
  %v1680 = vunpack.c.l.b16 %v1164
  %v1681 = vunpack.c.l.b16 %v1165
  %v1682 = vunpack.c.l.b16 %v1166
  %v1683 = vunpack.c.l.b16 %v1167
  %v1684 = vunpack.c.l.b16 %v1168
  %v1685 = vunpack.c.l.b16 %v1169
  %v1686 = vunpack.c.l.b16 %v1170
  %v1687 = vunpack.c.l.b16 %v1171
  %v1688 = vunpack.c.l.b16 %v1172
  %v1689 = vunpack.c.l.b16 %v1173
  %v1690 = vunpack.c.l.b16 %v1174
  %v1691 = vunpack.c.l.b16 %v1175
  %v1692 = vunpack.c.l.b16 %v1176
  %v1693 = vunpack.c.l.b16 %v1177
  %v1694 = vunpack.c.l.b16 %v1178
  %v1695 = vunpack.c.l.b16 %v1179
  %v1696 = vunpack.c.l.b16 %v1180
  %v1697 = vunpack.c.l.b16 %v1181
  %v1698 = vunpack.c.l.b16 %v1182
  %v1699 = vunpack.c.l.b16 %v1183
  %v1700 = vunpack.c.l.b16 %v1184
  %v1701 = vunpack.c.l.b16 %v1185
  %v1702 = vunpack.c.l.b16 %v1186
  %v1703 = vunpack.c.l.b16 %v1187
  %v1704 = vunpack.c.l.b16 %v1188
  %v1705 = vunpack.c.l.b16 %v1189
  %v1706 = vunpack.c.l.b16 %v1190
  %v1707 = vunpack.c.l.b16 %v1191
  %v1708 = vunpack.c.l.b16 %v1192
  %v1709 = vunpack.c.l.b16 %v1193
  %v1710 = vunpack.c.l.b16 %v1194
  %v1711 = vunpack.c.l.b16 %v1195
  %v1712 = vunpack.c.l.b16 %v1196
  %v1713 = vunpack.c.l.b16 %v1197
  %v1714 = vunpack.c.l.b16 %v1198
  %v1715 = vunpack.c.l.b16 %v1199
  %v1716 = vunpack.c.l.b16 %v1200
  %v1717 = vunpack.c.l.b16 %v1201
  %v1718 = vunpack.c.l.b16 %v1202
  %v1719 = vunpack.c.l.b16 %v1203
  %v1720 = vunpack.c.l.b16 %v1204
  %v1721 = vunpack.c.l.b16 %v1205
  %v1722 = vunpack.c.l.b16 %v1206
  %v1723 = vunpack.c.l.b16 %v1207
  %v1724 = vunpack.c.l.b16 %v1208
  %v1725 = vunpack.c.l.b16 %v1209
  %v1726 = vunpack.c.l.b16 %v1210
  %v1727 = vunpack.c.l.b16 %v1211
  %v1728 = vunpack.c.l.b16 %v1212
  %v1729 = vunpack.c.l.b16 %v1213
  %v1730 = vunpack.c.l.b16 %v1214
  %v1731 = vunpack.c.l.b16 %v1215
  %v1732 = vunpack.c.l.b16 %v1216
  %v1733 = vunpack.c.l.b16 %v1217
  %v1734 = vunpack.c.l.b16 %v1218
  %v1735 = vunpack.c.l.b16 %v1219
  %v1736 = vunpack.c.l.b16 %v1220
  %v1737 = vunpack.c.l.b16 %v1221
  %v1738 = vunpack.c.l.b16 %v1222
  %v1739 = vunpack.c.l.b16 %v1223
  %v1740 = vunpack.c.l.b16 %v1224
  %v1741 = vunpack.c.l.b16 %v1225
  %v1742 = vunpack.c.l.b16 %v1226
  %v1743 = vunpack.c.l.b16 %v1227
  %v1744 = vunpack.c.l.b16 %v1228
  %v1745 = vunpack.c.l.b16 %v1229
  %v1746 = vunpack.c.l.b16 %v1230
  %v1747 = vunpack.c.l.b16 %v1231
  %v1748 = vunpack.c.l.b16 %v1232
  %v1749 = vunpack.c.l.b16 %v1233
  %v1750 = vunpack.c.l.b16 %v1234
  %v1751 = vunpack.c.l.b16 %v1235
  %v1752 = vunpack.c.l.b16 %v1236
  %v1753 = vunpack.c.l.b16 %v1237
  %v1754 = vunpack.c.l.b16 %v1238
  %v1755 = vunpack.c.l.b16 %v1239
  %v1756 = vunpack.c.l.b16 %v1240
  %v1757 = vunpack.c.l.b16 %v1241
  %v1758 = vunpack.c.l.b16 %v1242
  %v1759 = vunpack.c.l.b16 %v1243
  %v1760 = vunpack.c.l.b16 %v1244
  %v1761 = vunpack.c.l.b16 %v1245
  %v1762 = vunpack.c.l.b16 %v1246
  %v1763 = vunpack.c.l.b16 %v1247
  %v1764 = vunpack.c.l.b16 %v1248
  %v1765 = vunpack.c.l.b16 %v1249
  %v1766 = vunpack.c.l.b16 %v1250
  %v1767 = vunpack.c.l.b16 %v1251
  %v1768 = vunpack.c.l.b16 %v1252
  %v1769 = vunpack.c.l.b16 %v1253
  %v1770 = vunpack.c.l.b16 %v1254
  %v1771 = vunpack.c.l.b16 %v1255
  %v1772 = vunpack.c.l.b16 %v1256
  %v1773 = vunpack.c.l.b16 %v1257
  %v1774 = vunpack.c.l.b16 %v1258
  %v1775 = vunpack.c.l.b16 %v1259
  %v1776 = vunpack.c.l.b16 %v1260
  %v1777 = vunpack.c.l.b16 %v1261
  %v1778 = vunpack.c.l.b16 %v1262
  %v1779 = vunpack.c.l.b16 %v1263
  %v1780 = vunpack.c.l.b16 %v1264
  %v1781 = vunpack.c.l.b16 %v1265
  %v1782 = vunpack.c.l.b16 %v1266
  %v1783 = vunpack.c.l.b16 %v1267
  %v1784 = vunpack.c.l.b16 %v1268
  %v1785 = vunpack.c.l.b16 %v1269
  %v1786 = vunpack.c.l.b16 %v1270
  %v1787 = vunpack.c.l.b16 %v1271
  %v1788 = vunpack.c.l.b16 %v1272
  %v1789 = vunpack.c.l.b16 %v1273
  %v1790 = vunpack.c.l.b16 %v1274
  %v1791 = vunpack.c.l.b16 %v1275
  %v1792 = vunpack.c.l.b16 %v1276
  %v1793 = vunpack.c.l.b16 %v1277
  %v1794 = vunpack.c.l.b16 %v1278
  %v1795 = vunpack.c.l.b16 %v1279
  %v1796 = vunpack.c.l.b16 %v1280
  %v1797 = vunpack.c.l.b16 %v1281
  %v1798 = vunpack.c.l.b16 %v1282
  %v1799 = vunpack.c.l.b16 %v1283
  %v1800 = vunpack.c.l.b16 %v1284
  %v1801 = vunpack.c.l.b16 %v1285
  %v1802 = vunpack.c.l.b16 %v1286
  %v1803 = vunpack.c.l.b16 %v1287
  %v1804 = vunpack.c.l.b16 %v1288
  %v1805 = vunpack.c.l.b16 %v1289
  %v1806 = vunpack.c.l.b16 %v1290
  %v1807 = vunpack.c.l.b16 %v1291
  %v1808 = vunpack.c.l.b16 %v1292
  %v1809 = vunpack.c.l.b16 %v1293
  %v1810 = vunpack.c.l.b16 %v1294
  %v1811 = vunpack.c.l.b16 %v1295
  %v1812 = vunpack.c.l.b16 %v1296
  %v1813 = vunpack.c.l.b16 %v1297
  %v1814 = vunpack.c.l.b16 %v1298
  %v1815 = vunpack.c.l.b16 %v1299
  %v1816 = vunpack.c.l.b16 %v1300
  %v1817 = vunpack.c.l.b16 %v1301
  %v1818 = vunpack.c.l.b16 %v1302
  %v1819 = vunpack.c.l.b16 %v1303
  %v1820 = vunpack.c.l.b16 %v1304
  %v1821 = vunpack.c.l.b16 %v1305
  %v1822 = vunpack.c.l.b16 %v1306
  %v1823 = vunpack.c.l.b16 %v1307
  %v1824 = vunpack.c.l.b16 %v1308
  %v1825 = vunpack.c.l.b16 %v1309
  %v1826 = vunpack.c.l.b16 %v1310
  %v1827 = vunpack.c.l.b16 %v1311
  %v1828 = vunpack.c.l.b16 %v1312
  %v1829 = vunpack.c.l.b16 %v1313
  %v1830 = vunpack.c.l.b16 %v1314
  %v1831 = vunpack.c.l.b16 %v1315
  %v1832 = vunpack.c.l.b16 %v1316
  %v1833 = vunpack.c.l.b16 %v1317
  %v1834 = vunpack.c.l.b16 %v1318
  %v1835 = vunpack.c.l.b16 %v1319
  %v1836 = vunpack.c.l.b16 %v1320
  %v1837 = vunpack.c.l.b16 %v1321
  %v1838 = vunpack.c.l.b16 %v1322
  %v1839 = vunpack.c.l.b16 %v1323
  %v1840 = vunpack.c.l.b16 %v1324
  %v1841 = vunpack.c.l.b16 %v1325
  %v1842 = vunpack.c.l.b16 %v1326
  %v1843 = vunpack.c.l.b16 %v1327
  %v1844 = vunpack.c.l.b16 %v1328
  %v1845 = vunpack.c.l.b16 %v1329
  %v1846 = vunpack.c.l.b16 %v1330
  %v1847 = vunpack.c.l.b16 %v1331
  %v1848 = vunpack.c.l.b16 %v1332
  %v1849 = vunpack.c.l.b16 %v1333
  %v1850 = vunpack.c.l.b16 %v1334
  %v1851 = vunpack.c.l.b16 %v1335
  %v1852 = vpack.c.b16 %v1597, %v1596
  %v1853 = vpack.c.b16 %v1599, %v1598
  %v1854 = vpack.c.b16 %v1601, %v1600
  %v1855 = vpack.c.b16 %v1603, %v1602
  %v1856 = vpack.c.b16 %v1605, %v1604
  %v1857 = vpack.c.b16 %v1607, %v1606
  %v1858 = vpack.c.b16 %v1609, %v1608
  %v1859 = vpack.c.b16 %v1611, %v1610
  %v1860 = vpack.c.b16 %v1613, %v1612
  %v1861 = vpack.c.b16 %v1615, %v1614
  %v1862 = vpack.c.b16 %v1617, %v1616
  %v1863 = vpack.c.b16 %v1619, %v1618
  %v1864 = vpack.c.b16 %v1621, %v1620
  %v1865 = vpack.c.b16 %v1623, %v1622
  %v1866 = vpack.c.b16 %v1625, %v1624
  %v1867 = vpack.c.b16 %v1627, %v1626
  %v1868 = vpack.c.b16 %v1629, %v1628
  %v1869 = vpack.c.b16 %v1631, %v1630
  %v1870 = vpack.c.b16 %v1633, %v1632
  %v1871 = vpack.c.b16 %v1635, %v1634
  %v1872 = vpack.c.b16 %v1637, %v1636
  %v1873 = vpack.c.b16 %v1639, %v1638
  %v1874 = vpack.c.b16 %v1641, %v1640
  %v1875 = vpack.c.b16 %v1643, %v1642
  %v1876 = vpack.c.b16 %v1645, %v1644
  %v1877 = vpack.c.b16 %v1647, %v1646
  %v1878 = vpack.c.b16 %v1649, %v1648
  %v1879 = vpack.c.b16 %v1651, %v1650
  %v1880 = vpack.c.b16 %v1653, %v1652
  %v1881 = vpack.c.b16 %v1655, %v1654
  %v1882 = vpack.c.b16 %v1657, %v1656
  %v1883 = vpack.c.b16 %v1659, %v1658
  %v1884 = vpack.c.b16 %v1661, %v1660
  %v1885 = vpack.c.b16 %v1663, %v1662
  %v1886 = vpack.c.b16 %v1665, %v1664
  %v1887 = vpack.c.b16 %v1667, %v1666
  %v1888 = vpack.c.b16 %v1669, %v1668
  %v1889 = vpack.c.b16 %v1671, %v1670
  %v1890 = vpack.c.b16 %v1673, %v1672
  %v1891 = vpack.c.b16 %v1675, %v1674
  %v1892 = vpack.c.b16 %v1677, %v1676
  %v1893 = vpack.c.b16 %v1679, %v1678
  %v1894 = vpack.c.b16 %v1681, %v1680
  %v1895 = vpack.c.b16 %v1683, %v1682
  %v1896 = vpack.c.b16 %v1685, %v1684
  %v1897 = vpack.c.b16 %v1687, %v1686
  %v1898 = vpack.c.b16 %v1689, %v1688
  %v1899 = vpack.c.b16 %v1691, %v1690
  %v1900 = vpack.c.b16 %v1693, %v1692
  %v1901 = vpack.c.b16 %v1695, %v1694
  %v1902 = vpack.c.b16 %v1697, %v1696
  %v1903 = vpack.c.b16 %v1699, %v1698
  %v1904 = vpack.c.b16 %v1701, %v1700
  %v1905 = vpack.c.b16 %v1703, %v1702
  %v1906 = vpack.c.b16 %v1705, %v1704
  %v1907 = vpack.c.b16 %v1707, %v1706
  %v1908 = vpack.c.b16 %v1709, %v1708
  %v1909 = vpack.c.b16 %v1711, %v1710
  %v1910 = vpack.c.b16 %v1713, %v1712
  %v1911 = vpack.c.b16 %v1715, %v1714
  %v1912 = vpack.c.b16 %v1717, %v1716
  %v1913 = vpack.c.b16 %v1719, %v1718
  %v1914 = vpack.c.b16 %v1721, %v1720
  %v1915 = vpack.c.b16 %v1723, %v1722
  %v1916 = vpack.c.b16 %v1725, %v1724
  %v1917 = vpack.c.b16 %v1727, %v1726
  %v1918 = vpack.c.b16 %v1729, %v1728
  %v1919 = vpack.c.b16 %v1731, %v1730
  %v1920 = vpack.c.b16 %v1733, %v1732
  %v1921 = vpack.c.b16 %v1735, %v1734
  %v1922 = vpack.c.b16 %v1737, %v1736
  %v1923 = vpack.c.b16 %v1739, %v1738
  %v1924 = vpack.c.b16 %v1741, %v1740
  %v1925 = vpack.c.b16 %v1743, %v1742
  %v1926 = vpack.c.b16 %v1745, %v1744
  %v1927 = vpack.c.b16 %v1747, %v1746
  %v1928 = vpack.c.b16 %v1749, %v1748
  %v1929 = vpack.c.b16 %v1751, %v1750
  %v1930 = vpack.c.b16 %v1753, %v1752
  %v1931 = vpack.c.b16 %v1755, %v1754
  %v1932 = vpack.c.b16 %v1757, %v1756
  %v1933 = vpack.c.b16 %v1759, %v1758
  %v1934 = vpack.c.b16 %v1761, %v1760
  %v1935 = vpack.c.b16 %v1763, %v1762
  %v1936 = vpack.c.b16 %v1765, %v1764
  %v1937 = vpack.c.b16 %v1767, %v1766
  %v1938 = vpack.c.b16 %v1769, %v1768
  %v1939 = vpack.c.b16 %v1771, %v1770
  %v1940 = vpack.c.b16 %v1773, %v1772
  %v1941 = vpack.c.b16 %v1775, %v1774
  %v1942 = vpack.c.b16 %v1777, %v1776
  %v1943 = vpack.c.b16 %v1779, %v1778
  %v1944 = vpack.c.b16 %v1781, %v1780
  %v1945 = vpack.c.b16 %v1783, %v1782
  %v1946 = vpack.c.b16 %v1785, %v1784
  %v1947 = vpack.c.b16 %v1787, %v1786
  %v1948 = vpack.c.b16 %v1789, %v1788
  %v1949 = vpack.c.b16 %v1791, %v1790
  %v1950 = vpack.c.b16 %v1793, %v1792
  %v1951 = vpack.c.b16 %v1795, %v1794
  %v1952 = vpack.c.b16 %v1797, %v1796
  %v1953 = vpack.c.b16 %v1799, %v1798
  %v1954 = vpack.c.b16 %v1801, %v1800
  %v1955 = vpack.c.b16 %v1803, %v1802
  %v1956 = vpack.c.b16 %v1805, %v1804
  %v1957 = vpack.c.b16 %v1807, %v1806
  %v1958 = vpack.c.b16 %v1809, %v1808
  %v1959 = vpack.c.b16 %v1811, %v1810
  %v1960 = vpack.c.b16 %v1813, %v1812
  %v1961 = vpack.c.b16 %v1815, %v1814
  %v1962 = vpack.c.b16 %v1817, %v1816
  %v1963 = vpack.c.b16 %v1819, %v1818
  %v1964 = vpack.c.b16 %v1821, %v1820
  %v1965 = vpack.c.b16 %v1823, %v1822
  %v1966 = vpack.c.b16 %v1825, %v1824
  %v1967 = vpack.c.b16 %v1827, %v1826
  %v1968 = vpack.c.b16 %v1829, %v1828
  %v1969 = vpack.c.b16 %v1831, %v1830
  %v1970 = vpack.c.b16 %v1833, %v1832
  %v1971 = vpack.c.b16 %v1835, %v1834
  %v1972 = vpack.c.b16 %v1837, %v1836
  %v1973 = vpack.c.b16 %v1839, %v1838
  %v1974 = vpack.c.b16 %v1841, %v1840
  %v1975 = vpack.c.b16 %v1843, %v1842
  %v1976 = vpack.c.b16 %v1845, %v1844
  %v1977 = vpack.c.b16 %v1847, %v1846
  %v1978 = vpack.c.b16 %v1849, %v1848
  %v1979 = vpack.c.b16 %v1851, %v1850
  %2108 = vmatpush.bf16.msra.mxu0 %v1859
  %2109 = vmatpush.bf16.msra.mxu0 %v1858
  %2110 = vmatpush.bf16.msra.mxu0 %v1857
  %2111 = vmatpush.bf16.msra.mxu0 %v1856
  %2112 = vmatpush.bf16.msra.mxu0 %v1855
  %2113 = vmatpush.bf16.msra.mxu0 %v1854
  %2114 = vmatpush.bf16.msra.mxu0 %v1853
  %2115 = vmatpush.bf16.msra.mxu0 %v1852
  %2116 = vmatmul.bf16.gmra.mxu0 %v952
  %v2117 = vpop.f32.mrf.mxu0
  %v2118 = vadd.f32 %v1338, %v2117
  %v2119 = vpop.f32.mrf.mxu0
  %v2120 = vadd.f32 %v1338, %v2119
  %2121 = vmatmul.bf16.gmra.mxu0 %v968
  %v2122 = vpop.f32.mrf.mxu0
  %v2123 = vadd.f32 %v1338, %v2122
  %v2124 = vpop.f32.mrf.mxu0
  %v2125 = vadd.f32 %v1338, %v2124
  %2126 = vmatmul.bf16.gmra.mxu0 %v984
  %v2127 = vpop.f32.mrf.mxu0
  %v2128 = vadd.f32 %v1338, %v2127
  %v2129 = vpop.f32.mrf.mxu0
  %v2130 = vadd.f32 %v1338, %v2129
  %2131 = vmatmul.bf16.gmra.mxu0 %v1000
  %v2132 = vpop.f32.mrf.mxu0
  %v2133 = vadd.f32 %v1338, %v2132
  %v2134 = vpop.f32.mrf.mxu0
  %v2135 = vadd.f32 %v1338, %v2134
  %2136 = vmatmul.bf16.gmra.mxu0 %v1016
  %v2137 = vpop.f32.mrf.mxu0
  %v2138 = vadd.f32 %v1338, %v2137
  %v2139 = vpop.f32.mrf.mxu0
  %v2140 = vadd.f32 %v1338, %v2139
  %2141 = vmatmul.bf16.gmra.mxu0 %v1032
  %v2142 = vpop.f32.mrf.mxu0
  %v2143 = vadd.f32 %v1338, %v2142
  %v2144 = vpop.f32.mrf.mxu0
  %v2145 = vadd.f32 %v1338, %v2144
  %2146 = vmatmul.bf16.gmra.mxu0 %v1048
  %v2147 = vpop.f32.mrf.mxu0
  %v2148 = vadd.f32 %v1338, %v2147
  %v2149 = vpop.f32.mrf.mxu0
  %v2150 = vadd.f32 %v1338, %v2149
  %2151 = vmatmul.bf16.gmra.mxu0 %v1064
  %v2152 = vpop.f32.mrf.mxu0
  %v2153 = vadd.f32 %v1338, %v2152
  %v2154 = vpop.f32.mrf.mxu0
  %v2155 = vadd.f32 %v1338, %v2154
  %2156 = vdwg.mxu0
  %2157 = vmatpush.bf16.msra.mxu0 %v1867
  %2158 = vmatpush.bf16.msra.mxu0 %v1866
  %2159 = vmatpush.bf16.msra.mxu0 %v1865
  %2160 = vmatpush.bf16.msra.mxu0 %v1864
  %2161 = vmatpush.bf16.msra.mxu0 %v1863
  %2162 = vmatpush.bf16.msra.mxu0 %v1862
  %2163 = vmatpush.bf16.msra.mxu0 %v1861
  %2164 = vmatpush.bf16.msra.mxu0 %v1860
  %2165 = vmatmul.bf16.gmra.mxu0 %v953
  %v2166 = vpop.f32.mrf.mxu0
  %v2167 = vadd.f32 %v2118, %v2166
  %v2168 = vpop.f32.mrf.mxu0
  %v2169 = vadd.f32 %v2120, %v2168
  %2170 = vmatmul.bf16.gmra.mxu0 %v969
  %v2171 = vpop.f32.mrf.mxu0
  %v2172 = vadd.f32 %v2123, %v2171
  %v2173 = vpop.f32.mrf.mxu0
  %v2174 = vadd.f32 %v2125, %v2173
  %2175 = vmatmul.bf16.gmra.mxu0 %v985
  %v2176 = vpop.f32.mrf.mxu0
  %v2177 = vadd.f32 %v2128, %v2176
  %v2178 = vpop.f32.mrf.mxu0
  %v2179 = vadd.f32 %v2130, %v2178
  %2180 = vmatmul.bf16.gmra.mxu0 %v1001
  %v2181 = vpop.f32.mrf.mxu0
  %v2182 = vadd.f32 %v2133, %v2181
  %v2183 = vpop.f32.mrf.mxu0
  %v2184 = vadd.f32 %v2135, %v2183
  %2185 = vmatmul.bf16.gmra.mxu0 %v1017
  %v2186 = vpop.f32.mrf.mxu0
  %v2187 = vadd.f32 %v2138, %v2186
  %v2188 = vpop.f32.mrf.mxu0
  %v2189 = vadd.f32 %v2140, %v2188
  %2190 = vmatmul.bf16.gmra.mxu0 %v1033
  %v2191 = vpop.f32.mrf.mxu0
  %v2192 = vadd.f32 %v2143, %v2191
  %v2193 = vpop.f32.mrf.mxu0
  %v2194 = vadd.f32 %v2145, %v2193
  %2195 = vmatmul.bf16.gmra.mxu0 %v1049
  %v2196 = vpop.f32.mrf.mxu0
  %v2197 = vadd.f32 %v2148, %v2196
  %v2198 = vpop.f32.mrf.mxu0
  %v2199 = vadd.f32 %v2150, %v2198
  %2200 = vmatmul.bf16.gmra.mxu0 %v1065
  %v2201 = vpop.f32.mrf.mxu0
  %v2202 = vadd.f32 %v2153, %v2201
  %v2203 = vpop.f32.mrf.mxu0
  %v2204 = vadd.f32 %v2155, %v2203
  %2205 = vdwg.mxu0
  %2206 = vmatpush.bf16.msra.mxu0 %v1875
  %2207 = vmatpush.bf16.msra.mxu0 %v1874
  %2208 = vmatpush.bf16.msra.mxu0 %v1873
  %2209 = vmatpush.bf16.msra.mxu0 %v1872
  %2210 = vmatpush.bf16.msra.mxu0 %v1871
  %2211 = vmatpush.bf16.msra.mxu0 %v1870
  %2212 = vmatpush.bf16.msra.mxu0 %v1869
  %2213 = vmatpush.bf16.msra.mxu0 %v1868
  %2214 = vmatmul.bf16.gmra.mxu0 %v954
  %v2215 = vpop.f32.mrf.mxu0
  %v2216 = vadd.f32 %v2167, %v2215
  %v2217 = vpop.f32.mrf.mxu0
  %v2218 = vadd.f32 %v2169, %v2217
  %2219 = vmatmul.bf16.gmra.mxu0 %v970
  %v2220 = vpop.f32.mrf.mxu0
  %v2221 = vadd.f32 %v2172, %v2220
  %v2222 = vpop.f32.mrf.mxu0
  %v2223 = vadd.f32 %v2174, %v2222
  %2224 = vmatmul.bf16.gmra.mxu0 %v986
  %v2225 = vpop.f32.mrf.mxu0
  %v2226 = vadd.f32 %v2177, %v2225
  %v2227 = vpop.f32.mrf.mxu0
  %v2228 = vadd.f32 %v2179, %v2227
  %2229 = vmatmul.bf16.gmra.mxu0 %v1002
  %v2230 = vpop.f32.mrf.mxu0
  %v2231 = vadd.f32 %v2182, %v2230
  %v2232 = vpop.f32.mrf.mxu0
  %v2233 = vadd.f32 %v2184, %v2232
  %2234 = vmatmul.bf16.gmra.mxu0 %v1018
  %v2235 = vpop.f32.mrf.mxu0
  %v2236 = vadd.f32 %v2187, %v2235
  %v2237 = vpop.f32.mrf.mxu0
  %v2238 = vadd.f32 %v2189, %v2237
  %2239 = vmatmul.bf16.gmra.mxu0 %v1034
  %v2240 = vpop.f32.mrf.mxu0
  %v2241 = vadd.f32 %v2192, %v2240
  %v2242 = vpop.f32.mrf.mxu0
  %v2243 = vadd.f32 %v2194, %v2242
  %2244 = vmatmul.bf16.gmra.mxu0 %v1050
  %v2245 = vpop.f32.mrf.mxu0
  %v2246 = vadd.f32 %v2197, %v2245
  %v2247 = vpop.f32.mrf.mxu0
  %v2248 = vadd.f32 %v2199, %v2247
  %2249 = vmatmul.bf16.gmra.mxu0 %v1066
  %v2250 = vpop.f32.mrf.mxu0
  %v2251 = vadd.f32 %v2202, %v2250
  %v2252 = vpop.f32.mrf.mxu0
  %v2253 = vadd.f32 %v2204, %v2252
  %2254 = vdwg.mxu0
  %2255 = vmatpush.bf16.msra.mxu0 %v1883
  %2256 = vmatpush.bf16.msra.mxu0 %v1882
  %2257 = vmatpush.bf16.msra.mxu0 %v1881
  %2258 = vmatpush.bf16.msra.mxu0 %v1880
  %2259 = vmatpush.bf16.msra.mxu0 %v1879
  %2260 = vmatpush.bf16.msra.mxu0 %v1878
  %2261 = vmatpush.bf16.msra.mxu0 %v1877
  %2262 = vmatpush.bf16.msra.mxu0 %v1876
  %2263 = vmatmul.bf16.gmra.mxu0 %v955
  %v2264 = vpop.f32.mrf.mxu0
  %v2265 = vadd.f32 %v2216, %v2264
  %v2266 = vpop.f32.mrf.mxu0
  %v2267 = vadd.f32 %v2218, %v2266
  %2268 = vmatmul.bf16.gmra.mxu0 %v971
  %v2269 = vpop.f32.mrf.mxu0
  %v2270 = vadd.f32 %v2221, %v2269
  %v2271 = vpop.f32.mrf.mxu0
  %v2272 = vadd.f32 %v2223, %v2271
  %2273 = vmatmul.bf16.gmra.mxu0 %v987
  %v2274 = vpop.f32.mrf.mxu0
  %v2275 = vadd.f32 %v2226, %v2274
  %v2276 = vpop.f32.mrf.mxu0
  %v2277 = vadd.f32 %v2228, %v2276
  %2278 = vmatmul.bf16.gmra.mxu0 %v1003
  %v2279 = vpop.f32.mrf.mxu0
  %v2280 = vadd.f32 %v2231, %v2279
  %v2281 = vpop.f32.mrf.mxu0
  %v2282 = vadd.f32 %v2233, %v2281
  %2283 = vmatmul.bf16.gmra.mxu0 %v1019
  %v2284 = vpop.f32.mrf.mxu0
  %v2285 = vadd.f32 %v2236, %v2284
  %v2286 = vpop.f32.mrf.mxu0
  %v2287 = vadd.f32 %v2238, %v2286
  %2288 = vmatmul.bf16.gmra.mxu0 %v1035
  %v2289 = vpop.f32.mrf.mxu0
  %v2290 = vadd.f32 %v2241, %v2289
  %v2291 = vpop.f32.mrf.mxu0
  %v2292 = vadd.f32 %v2243, %v2291
  %2293 = vmatmul.bf16.gmra.mxu0 %v1051
  %v2294 = vpop.f32.mrf.mxu0
  %v2295 = vadd.f32 %v2246, %v2294
  %v2296 = vpop.f32.mrf.mxu0
  %v2297 = vadd.f32 %v2248, %v2296
  %2298 = vmatmul.bf16.gmra.mxu0 %v1067
  %v2299 = vpop.f32.mrf.mxu0
  %v2300 = vadd.f32 %v2251, %v2299
  %v2301 = vpop.f32.mrf.mxu0
  %v2302 = vadd.f32 %v2253, %v2301
  %2303 = vdwg.mxu0
  %2304 = vmatpush.bf16.msra.mxu0 %v1891
  %2305 = vmatpush.bf16.msra.mxu0 %v1890
  %2306 = vmatpush.bf16.msra.mxu0 %v1889
  %2307 = vmatpush.bf16.msra.mxu0 %v1888
  %2308 = vmatpush.bf16.msra.mxu0 %v1887
  %2309 = vmatpush.bf16.msra.mxu0 %v1886
  %2310 = vmatpush.bf16.msra.mxu0 %v1885
  %2311 = vmatpush.bf16.msra.mxu0 %v1884
  %2312 = vmatmul.bf16.gmra.mxu0 %v956
  %v2313 = vpop.f32.mrf.mxu0
  %v2314 = vadd.f32 %v2265, %v2313
  %v2315 = vpop.f32.mrf.mxu0
  %v2316 = vadd.f32 %v2267, %v2315
  %2317 = vmatmul.bf16.gmra.mxu0 %v972
  %v2318 = vpop.f32.mrf.mxu0
  %v2319 = vadd.f32 %v2270, %v2318
  %v2320 = vpop.f32.mrf.mxu0
  %v2321 = vadd.f32 %v2272, %v2320
  %2322 = vmatmul.bf16.gmra.mxu0 %v988
  %v2323 = vpop.f32.mrf.mxu0
  %v2324 = vadd.f32 %v2275, %v2323
  %v2325 = vpop.f32.mrf.mxu0
  %v2326 = vadd.f32 %v2277, %v2325
  %2327 = vmatmul.bf16.gmra.mxu0 %v1004
  %v2328 = vpop.f32.mrf.mxu0
  %v2329 = vadd.f32 %v2280, %v2328
  %v2330 = vpop.f32.mrf.mxu0
  %v2331 = vadd.f32 %v2282, %v2330
  %2332 = vmatmul.bf16.gmra.mxu0 %v1020
  %v2333 = vpop.f32.mrf.mxu0
  %v2334 = vadd.f32 %v2285, %v2333
  %v2335 = vpop.f32.mrf.mxu0
  %v2336 = vadd.f32 %v2287, %v2335
  %2337 = vmatmul.bf16.gmra.mxu0 %v1036
  %v2338 = vpop.f32.mrf.mxu0
  %v2339 = vadd.f32 %v2290, %v2338
  %v2340 = vpop.f32.mrf.mxu0
  %v2341 = vadd.f32 %v2292, %v2340
  %2342 = vmatmul.bf16.gmra.mxu0 %v1052
  %v2343 = vpop.f32.mrf.mxu0
  %v2344 = vadd.f32 %v2295, %v2343
  %v2345 = vpop.f32.mrf.mxu0
  %v2346 = vadd.f32 %v2297, %v2345
  %2347 = vmatmul.bf16.gmra.mxu0 %v1068
  %v2348 = vpop.f32.mrf.mxu0
  %v2349 = vadd.f32 %v2300, %v2348
  %v2350 = vpop.f32.mrf.mxu0
  %v2351 = vadd.f32 %v2302, %v2350
  %2352 = vdwg.mxu0
  %2353 = vmatpush.bf16.msra.mxu0 %v1899
  %2354 = vmatpush.bf16.msra.mxu0 %v1898
  %2355 = vmatpush.bf16.msra.mxu0 %v1897
  %2356 = vmatpush.bf16.msra.mxu0 %v1896
  %2357 = vmatpush.bf16.msra.mxu0 %v1895
  %2358 = vmatpush.bf16.msra.mxu0 %v1894
  %2359 = vmatpush.bf16.msra.mxu0 %v1893
  %2360 = vmatpush.bf16.msra.mxu0 %v1892
  %2361 = vmatmul.bf16.gmra.mxu0 %v957
  %v2362 = vpop.f32.mrf.mxu0
  %v2363 = vadd.f32 %v2314, %v2362
  %v2364 = vpop.f32.mrf.mxu0
  %v2365 = vadd.f32 %v2316, %v2364
  %2366 = vmatmul.bf16.gmra.mxu0 %v973
  %v2367 = vpop.f32.mrf.mxu0
  %v2368 = vadd.f32 %v2319, %v2367
  %v2369 = vpop.f32.mrf.mxu0
  %v2370 = vadd.f32 %v2321, %v2369
  %2371 = vmatmul.bf16.gmra.mxu0 %v989
  %v2372 = vpop.f32.mrf.mxu0
  %v2373 = vadd.f32 %v2324, %v2372
  %v2374 = vpop.f32.mrf.mxu0
  %v2375 = vadd.f32 %v2326, %v2374
  %2376 = vmatmul.bf16.gmra.mxu0 %v1005
  %v2377 = vpop.f32.mrf.mxu0
  %v2378 = vadd.f32 %v2329, %v2377
  %v2379 = vpop.f32.mrf.mxu0
  %v2380 = vadd.f32 %v2331, %v2379
  %2381 = vmatmul.bf16.gmra.mxu0 %v1021
  %v2382 = vpop.f32.mrf.mxu0
  %v2383 = vadd.f32 %v2334, %v2382
  %v2384 = vpop.f32.mrf.mxu0
  %v2385 = vadd.f32 %v2336, %v2384
  %2386 = vmatmul.bf16.gmra.mxu0 %v1037
  %v2387 = vpop.f32.mrf.mxu0
  %v2388 = vadd.f32 %v2339, %v2387
  %v2389 = vpop.f32.mrf.mxu0
  %v2390 = vadd.f32 %v2341, %v2389
  %2391 = vmatmul.bf16.gmra.mxu0 %v1053
  %v2392 = vpop.f32.mrf.mxu0
  %v2393 = vadd.f32 %v2344, %v2392
  %v2394 = vpop.f32.mrf.mxu0
  %v2395 = vadd.f32 %v2346, %v2394
  %2396 = vmatmul.bf16.gmra.mxu0 %v1069
  %v2397 = vpop.f32.mrf.mxu0
  %v2398 = vadd.f32 %v2349, %v2397
  %v2399 = vpop.f32.mrf.mxu0
  %v2400 = vadd.f32 %v2351, %v2399
  %2401 = vdwg.mxu0
  %2402 = vmatpush.bf16.msra.mxu0 %v1907
  %2403 = vmatpush.bf16.msra.mxu0 %v1906
  %2404 = vmatpush.bf16.msra.mxu0 %v1905
  %2405 = vmatpush.bf16.msra.mxu0 %v1904
  %2406 = vmatpush.bf16.msra.mxu0 %v1903
  %2407 = vmatpush.bf16.msra.mxu0 %v1902
  %2408 = vmatpush.bf16.msra.mxu0 %v1901
  %2409 = vmatpush.bf16.msra.mxu0 %v1900
  %2410 = vmatmul.bf16.gmra.mxu0 %v958
  %v2411 = vpop.f32.mrf.mxu0
  %v2412 = vadd.f32 %v2363, %v2411
  %v2413 = vpop.f32.mrf.mxu0
  %v2414 = vadd.f32 %v2365, %v2413
  %2415 = vmatmul.bf16.gmra.mxu0 %v974
  %v2416 = vpop.f32.mrf.mxu0
  %v2417 = vadd.f32 %v2368, %v2416
  %v2418 = vpop.f32.mrf.mxu0
  %v2419 = vadd.f32 %v2370, %v2418
  %2420 = vmatmul.bf16.gmra.mxu0 %v990
  %v2421 = vpop.f32.mrf.mxu0
  %v2422 = vadd.f32 %v2373, %v2421
  %v2423 = vpop.f32.mrf.mxu0
  %v2424 = vadd.f32 %v2375, %v2423
  %2425 = vmatmul.bf16.gmra.mxu0 %v1006
  %v2426 = vpop.f32.mrf.mxu0
  %v2427 = vadd.f32 %v2378, %v2426
  %v2428 = vpop.f32.mrf.mxu0
  %v2429 = vadd.f32 %v2380, %v2428
  %2430 = vmatmul.bf16.gmra.mxu0 %v1022
  %v2431 = vpop.f32.mrf.mxu0
  %v2432 = vadd.f32 %v2383, %v2431
  %v2433 = vpop.f32.mrf.mxu0
  %v2434 = vadd.f32 %v2385, %v2433
  %2435 = vmatmul.bf16.gmra.mxu0 %v1038
  %v2436 = vpop.f32.mrf.mxu0
  %v2437 = vadd.f32 %v2388, %v2436
  %v2438 = vpop.f32.mrf.mxu0
  %v2439 = vadd.f32 %v2390, %v2438
  %2440 = vmatmul.bf16.gmra.mxu0 %v1054
  %v2441 = vpop.f32.mrf.mxu0
  %v2442 = vadd.f32 %v2393, %v2441
  %v2443 = vpop.f32.mrf.mxu0
  %v2444 = vadd.f32 %v2395, %v2443
  %2445 = vmatmul.bf16.gmra.mxu0 %v1070
  %v2446 = vpop.f32.mrf.mxu0
  %v2447 = vadd.f32 %v2398, %v2446
  %v2448 = vpop.f32.mrf.mxu0
  %v2449 = vadd.f32 %v2400, %v2448
  %2450 = vdwg.mxu0
  %2451 = vmatpush.bf16.msra.mxu0 %v1915
  %2452 = vmatpush.bf16.msra.mxu0 %v1914
  %2453 = vmatpush.bf16.msra.mxu0 %v1913
  %2454 = vmatpush.bf16.msra.mxu0 %v1912
  %2455 = vmatpush.bf16.msra.mxu0 %v1911
  %2456 = vmatpush.bf16.msra.mxu0 %v1910
  %2457 = vmatpush.bf16.msra.mxu0 %v1909
  %2458 = vmatpush.bf16.msra.mxu0 %v1908
  %2459 = vmatmul.bf16.gmra.mxu0 %v959
  %v2460 = vpop.f32.mrf.mxu0
  %v2461 = vadd.f32 %v2412, %v2460
  %v2462 = vpop.f32.mrf.mxu0
  %v2463 = vadd.f32 %v2414, %v2462
  %2464 = vmatmul.bf16.gmra.mxu0 %v975
  %v2465 = vpop.f32.mrf.mxu0
  %v2466 = vadd.f32 %v2417, %v2465
  %v2467 = vpop.f32.mrf.mxu0
  %v2468 = vadd.f32 %v2419, %v2467
  %2469 = vmatmul.bf16.gmra.mxu0 %v991
  %v2470 = vpop.f32.mrf.mxu0
  %v2471 = vadd.f32 %v2422, %v2470
  %v2472 = vpop.f32.mrf.mxu0
  %v2473 = vadd.f32 %v2424, %v2472
  %2474 = vmatmul.bf16.gmra.mxu0 %v1007
  %v2475 = vpop.f32.mrf.mxu0
  %v2476 = vadd.f32 %v2427, %v2475
  %v2477 = vpop.f32.mrf.mxu0
  %v2478 = vadd.f32 %v2429, %v2477
  %2479 = vmatmul.bf16.gmra.mxu0 %v1023
  %v2480 = vpop.f32.mrf.mxu0
  %v2481 = vadd.f32 %v2432, %v2480
  %v2482 = vpop.f32.mrf.mxu0
  %v2483 = vadd.f32 %v2434, %v2482
  %2484 = vmatmul.bf16.gmra.mxu0 %v1039
  %v2485 = vpop.f32.mrf.mxu0
  %v2486 = vadd.f32 %v2437, %v2485
  %v2487 = vpop.f32.mrf.mxu0
  %v2488 = vadd.f32 %v2439, %v2487
  %2489 = vmatmul.bf16.gmra.mxu0 %v1055
  %v2490 = vpop.f32.mrf.mxu0
  %v2491 = vadd.f32 %v2442, %v2490
  %v2492 = vpop.f32.mrf.mxu0
  %v2493 = vadd.f32 %v2444, %v2492
  %2494 = vmatmul.bf16.gmra.mxu0 %v1071
  %v2495 = vpop.f32.mrf.mxu0
  %v2496 = vadd.f32 %v2447, %v2495
  %v2497 = vpop.f32.mrf.mxu0
  %v2498 = vadd.f32 %v2449, %v2497
  %2499 = vdwg.mxu0
  %2500 = vmatpush.bf16.msra.mxu0 %v1923
  %2501 = vmatpush.bf16.msra.mxu0 %v1922
  %2502 = vmatpush.bf16.msra.mxu0 %v1921
  %2503 = vmatpush.bf16.msra.mxu0 %v1920
  %2504 = vmatpush.bf16.msra.mxu0 %v1919
  %2505 = vmatpush.bf16.msra.mxu0 %v1918
  %2506 = vmatpush.bf16.msra.mxu0 %v1917
  %2507 = vmatpush.bf16.msra.mxu0 %v1916
  %2508 = vmatmul.bf16.gmra.mxu0 %v960
  %v2509 = vpop.f32.mrf.mxu0
  %v2510 = vadd.f32 %v2461, %v2509
  %v2511 = vpop.f32.mrf.mxu0
  %v2512 = vadd.f32 %v2463, %v2511
  %2513 = vmatmul.bf16.gmra.mxu0 %v976
  %v2514 = vpop.f32.mrf.mxu0
  %v2515 = vadd.f32 %v2466, %v2514
  %v2516 = vpop.f32.mrf.mxu0
  %v2517 = vadd.f32 %v2468, %v2516
  %2518 = vmatmul.bf16.gmra.mxu0 %v992
  %v2519 = vpop.f32.mrf.mxu0
  %v2520 = vadd.f32 %v2471, %v2519
  %v2521 = vpop.f32.mrf.mxu0
  %v2522 = vadd.f32 %v2473, %v2521
  %2523 = vmatmul.bf16.gmra.mxu0 %v1008
  %v2524 = vpop.f32.mrf.mxu0
  %v2525 = vadd.f32 %v2476, %v2524
  %v2526 = vpop.f32.mrf.mxu0
  %v2527 = vadd.f32 %v2478, %v2526
  %2528 = vmatmul.bf16.gmra.mxu0 %v1024
  %v2529 = vpop.f32.mrf.mxu0
  %v2530 = vadd.f32 %v2481, %v2529
  %v2531 = vpop.f32.mrf.mxu0
  %v2532 = vadd.f32 %v2483, %v2531
  %2533 = vmatmul.bf16.gmra.mxu0 %v1040
  %v2534 = vpop.f32.mrf.mxu0
  %v2535 = vadd.f32 %v2486, %v2534
  %v2536 = vpop.f32.mrf.mxu0
  %v2537 = vadd.f32 %v2488, %v2536
  %2538 = vmatmul.bf16.gmra.mxu0 %v1056
  %v2539 = vpop.f32.mrf.mxu0
  %v2540 = vadd.f32 %v2491, %v2539
  %v2541 = vpop.f32.mrf.mxu0
  %v2542 = vadd.f32 %v2493, %v2541
  %2543 = vmatmul.bf16.gmra.mxu0 %v1072
  %v2544 = vpop.f32.mrf.mxu0
  %v2545 = vadd.f32 %v2496, %v2544
  %v2546 = vpop.f32.mrf.mxu0
  %v2547 = vadd.f32 %v2498, %v2546
  %2548 = vdwg.mxu0
  %2549 = vmatpush.bf16.msra.mxu0 %v1931
  %2550 = vmatpush.bf16.msra.mxu0 %v1930
  %2551 = vmatpush.bf16.msra.mxu0 %v1929
  %2552 = vmatpush.bf16.msra.mxu0 %v1928
  %2553 = vmatpush.bf16.msra.mxu0 %v1927
  %2554 = vmatpush.bf16.msra.mxu0 %v1926
  %2555 = vmatpush.bf16.msra.mxu0 %v1925
  %2556 = vmatpush.bf16.msra.mxu0 %v1924
  %2557 = vmatmul.bf16.gmra.mxu0 %v961
  %v2558 = vpop.f32.mrf.mxu0
  %v2559 = vadd.f32 %v2510, %v2558
  %v2560 = vpop.f32.mrf.mxu0
  %v2561 = vadd.f32 %v2512, %v2560
  %2562 = vmatmul.bf16.gmra.mxu0 %v977
  %v2563 = vpop.f32.mrf.mxu0
  %v2564 = vadd.f32 %v2515, %v2563
  %v2565 = vpop.f32.mrf.mxu0
  %v2566 = vadd.f32 %v2517, %v2565
  %2567 = vmatmul.bf16.gmra.mxu0 %v993
  %v2568 = vpop.f32.mrf.mxu0
  %v2569 = vadd.f32 %v2520, %v2568
  %v2570 = vpop.f32.mrf.mxu0
  %v2571 = vadd.f32 %v2522, %v2570
  %2572 = vmatmul.bf16.gmra.mxu0 %v1009
  %v2573 = vpop.f32.mrf.mxu0
  %v2574 = vadd.f32 %v2525, %v2573
  %v2575 = vpop.f32.mrf.mxu0
  %v2576 = vadd.f32 %v2527, %v2575
  %2577 = vmatmul.bf16.gmra.mxu0 %v1025
  %v2578 = vpop.f32.mrf.mxu0
  %v2579 = vadd.f32 %v2530, %v2578
  %v2580 = vpop.f32.mrf.mxu0
  %v2581 = vadd.f32 %v2532, %v2580
  %2582 = vmatmul.bf16.gmra.mxu0 %v1041
  %v2583 = vpop.f32.mrf.mxu0
  %v2584 = vadd.f32 %v2535, %v2583
  %v2585 = vpop.f32.mrf.mxu0
  %v2586 = vadd.f32 %v2537, %v2585
  %2587 = vmatmul.bf16.gmra.mxu0 %v1057
  %v2588 = vpop.f32.mrf.mxu0
  %v2589 = vadd.f32 %v2540, %v2588
  %v2590 = vpop.f32.mrf.mxu0
  %v2591 = vadd.f32 %v2542, %v2590
  %2592 = vmatmul.bf16.gmra.mxu0 %v1073
  %v2593 = vpop.f32.mrf.mxu0
  %v2594 = vadd.f32 %v2545, %v2593
  %v2595 = vpop.f32.mrf.mxu0
  %v2596 = vadd.f32 %v2547, %v2595
  %2597 = vdwg.mxu0
  %2598 = vmatpush.bf16.msra.mxu0 %v1939
  %2599 = vmatpush.bf16.msra.mxu0 %v1938
  %2600 = vmatpush.bf16.msra.mxu0 %v1937
  %2601 = vmatpush.bf16.msra.mxu0 %v1936
  %2602 = vmatpush.bf16.msra.mxu0 %v1935
  %2603 = vmatpush.bf16.msra.mxu0 %v1934
  %2604 = vmatpush.bf16.msra.mxu0 %v1933
  %2605 = vmatpush.bf16.msra.mxu0 %v1932
  %2606 = vmatmul.bf16.gmra.mxu0 %v962
  %v2607 = vpop.f32.mrf.mxu0
  %v2608 = vadd.f32 %v2559, %v2607
  %v2609 = vpop.f32.mrf.mxu0
  %v2610 = vadd.f32 %v2561, %v2609
  %2611 = vmatmul.bf16.gmra.mxu0 %v978
  %v2612 = vpop.f32.mrf.mxu0
  %v2613 = vadd.f32 %v2564, %v2612
  %v2614 = vpop.f32.mrf.mxu0
  %v2615 = vadd.f32 %v2566, %v2614
  %2616 = vmatmul.bf16.gmra.mxu0 %v994
  %v2617 = vpop.f32.mrf.mxu0
  %v2618 = vadd.f32 %v2569, %v2617
  %v2619 = vpop.f32.mrf.mxu0
  %v2620 = vadd.f32 %v2571, %v2619
  %2621 = vmatmul.bf16.gmra.mxu0 %v1010
  %v2622 = vpop.f32.mrf.mxu0
  %v2623 = vadd.f32 %v2574, %v2622
  %v2624 = vpop.f32.mrf.mxu0
  %v2625 = vadd.f32 %v2576, %v2624
  %2626 = vmatmul.bf16.gmra.mxu0 %v1026
  %v2627 = vpop.f32.mrf.mxu0
  %v2628 = vadd.f32 %v2579, %v2627
  %v2629 = vpop.f32.mrf.mxu0
  %v2630 = vadd.f32 %v2581, %v2629
  %2631 = vmatmul.bf16.gmra.mxu0 %v1042
  %v2632 = vpop.f32.mrf.mxu0
  %v2633 = vadd.f32 %v2584, %v2632
  %v2634 = vpop.f32.mrf.mxu0
  %v2635 = vadd.f32 %v2586, %v2634
  %2636 = vmatmul.bf16.gmra.mxu0 %v1058
  %v2637 = vpop.f32.mrf.mxu0
  %v2638 = vadd.f32 %v2589, %v2637
  %v2639 = vpop.f32.mrf.mxu0
  %v2640 = vadd.f32 %v2591, %v2639
  %2641 = vmatmul.bf16.gmra.mxu0 %v1074
  %v2642 = vpop.f32.mrf.mxu0
  %v2643 = vadd.f32 %v2594, %v2642
  %v2644 = vpop.f32.mrf.mxu0
  %v2645 = vadd.f32 %v2596, %v2644
  %2646 = vdwg.mxu0
  %2647 = vmatpush.bf16.msra.mxu0 %v1947
  %2648 = vmatpush.bf16.msra.mxu0 %v1946
  %2649 = vmatpush.bf16.msra.mxu0 %v1945
  %2650 = vmatpush.bf16.msra.mxu0 %v1944
  %2651 = vmatpush.bf16.msra.mxu0 %v1943
  %2652 = vmatpush.bf16.msra.mxu0 %v1942
  %2653 = vmatpush.bf16.msra.mxu0 %v1941
  %2654 = vmatpush.bf16.msra.mxu0 %v1940
  %2655 = vmatmul.bf16.gmra.mxu0 %v963
  %v2656 = vpop.f32.mrf.mxu0
  %v2657 = vadd.f32 %v2608, %v2656
  %v2658 = vpop.f32.mrf.mxu0
  %v2659 = vadd.f32 %v2610, %v2658
  %2660 = vmatmul.bf16.gmra.mxu0 %v979
  %v2661 = vpop.f32.mrf.mxu0
  %v2662 = vadd.f32 %v2613, %v2661
  %v2663 = vpop.f32.mrf.mxu0
  %v2664 = vadd.f32 %v2615, %v2663
  %2665 = vmatmul.bf16.gmra.mxu0 %v995
  %v2666 = vpop.f32.mrf.mxu0
  %v2667 = vadd.f32 %v2618, %v2666
  %v2668 = vpop.f32.mrf.mxu0
  %v2669 = vadd.f32 %v2620, %v2668
  %2670 = vmatmul.bf16.gmra.mxu0 %v1011
  %v2671 = vpop.f32.mrf.mxu0
  %v2672 = vadd.f32 %v2623, %v2671
  %v2673 = vpop.f32.mrf.mxu0
  %v2674 = vadd.f32 %v2625, %v2673
  %2675 = vmatmul.bf16.gmra.mxu0 %v1027
  %v2676 = vpop.f32.mrf.mxu0
  %v2677 = vadd.f32 %v2628, %v2676
  %v2678 = vpop.f32.mrf.mxu0
  %v2679 = vadd.f32 %v2630, %v2678
  %2680 = vmatmul.bf16.gmra.mxu0 %v1043
  %v2681 = vpop.f32.mrf.mxu0
  %v2682 = vadd.f32 %v2633, %v2681
  %v2683 = vpop.f32.mrf.mxu0
  %v2684 = vadd.f32 %v2635, %v2683
  %2685 = vmatmul.bf16.gmra.mxu0 %v1059
  %v2686 = vpop.f32.mrf.mxu0
  %v2687 = vadd.f32 %v2638, %v2686
  %v2688 = vpop.f32.mrf.mxu0
  %v2689 = vadd.f32 %v2640, %v2688
  %2690 = vmatmul.bf16.gmra.mxu0 %v1075
  %v2691 = vpop.f32.mrf.mxu0
  %v2692 = vadd.f32 %v2643, %v2691
  %v2693 = vpop.f32.mrf.mxu0
  %v2694 = vadd.f32 %v2645, %v2693
  %2695 = vdwg.mxu0
  %2696 = vmatpush.bf16.msra.mxu0 %v1955
  %2697 = vmatpush.bf16.msra.mxu0 %v1954
  %2698 = vmatpush.bf16.msra.mxu0 %v1953
  %2699 = vmatpush.bf16.msra.mxu0 %v1952
  %2700 = vmatpush.bf16.msra.mxu0 %v1951
  %2701 = vmatpush.bf16.msra.mxu0 %v1950
  %2702 = vmatpush.bf16.msra.mxu0 %v1949
  %2703 = vmatpush.bf16.msra.mxu0 %v1948
  %2704 = vmatmul.bf16.gmra.mxu0 %v964
  %v2705 = vpop.f32.mrf.mxu0
  %v2706 = vadd.f32 %v2657, %v2705
  %v2707 = vpop.f32.mrf.mxu0
  %v2708 = vadd.f32 %v2659, %v2707
  %2709 = vmatmul.bf16.gmra.mxu0 %v980
  %v2710 = vpop.f32.mrf.mxu0
  %v2711 = vadd.f32 %v2662, %v2710
  %v2712 = vpop.f32.mrf.mxu0
  %v2713 = vadd.f32 %v2664, %v2712
  %2714 = vmatmul.bf16.gmra.mxu0 %v996
  %v2715 = vpop.f32.mrf.mxu0
  %v2716 = vadd.f32 %v2667, %v2715
  %v2717 = vpop.f32.mrf.mxu0
  %v2718 = vadd.f32 %v2669, %v2717
  %2719 = vmatmul.bf16.gmra.mxu0 %v1012
  %v2720 = vpop.f32.mrf.mxu0
  %v2721 = vadd.f32 %v2672, %v2720
  %v2722 = vpop.f32.mrf.mxu0
  %v2723 = vadd.f32 %v2674, %v2722
  %2724 = vmatmul.bf16.gmra.mxu0 %v1028
  %v2725 = vpop.f32.mrf.mxu0
  %v2726 = vadd.f32 %v2677, %v2725
  %v2727 = vpop.f32.mrf.mxu0
  %v2728 = vadd.f32 %v2679, %v2727
  %2729 = vmatmul.bf16.gmra.mxu0 %v1044
  %v2730 = vpop.f32.mrf.mxu0
  %v2731 = vadd.f32 %v2682, %v2730
  %v2732 = vpop.f32.mrf.mxu0
  %v2733 = vadd.f32 %v2684, %v2732
  %2734 = vmatmul.bf16.gmra.mxu0 %v1060
  %v2735 = vpop.f32.mrf.mxu0
  %v2736 = vadd.f32 %v2687, %v2735
  %v2737 = vpop.f32.mrf.mxu0
  %v2738 = vadd.f32 %v2689, %v2737
  %2739 = vmatmul.bf16.gmra.mxu0 %v1076
  %v2740 = vpop.f32.mrf.mxu0
  %v2741 = vadd.f32 %v2692, %v2740
  %v2742 = vpop.f32.mrf.mxu0
  %v2743 = vadd.f32 %v2694, %v2742
  %2744 = vdwg.mxu0
  %2745 = vmatpush.bf16.msra.mxu0 %v1963
  %2746 = vmatpush.bf16.msra.mxu0 %v1962
  %2747 = vmatpush.bf16.msra.mxu0 %v1961
  %2748 = vmatpush.bf16.msra.mxu0 %v1960
  %2749 = vmatpush.bf16.msra.mxu0 %v1959
  %2750 = vmatpush.bf16.msra.mxu0 %v1958
  %2751 = vmatpush.bf16.msra.mxu0 %v1957
  %2752 = vmatpush.bf16.msra.mxu0 %v1956
  %2753 = vmatmul.bf16.gmra.mxu0 %v965
  %v2754 = vpop.f32.mrf.mxu0
  %v2755 = vadd.f32 %v2706, %v2754
  %v2756 = vpop.f32.mrf.mxu0
  %v2757 = vadd.f32 %v2708, %v2756
  %2758 = vmatmul.bf16.gmra.mxu0 %v981
  %v2759 = vpop.f32.mrf.mxu0
  %v2760 = vadd.f32 %v2711, %v2759
  %v2761 = vpop.f32.mrf.mxu0
  %v2762 = vadd.f32 %v2713, %v2761
  %2763 = vmatmul.bf16.gmra.mxu0 %v997
  %v2764 = vpop.f32.mrf.mxu0
  %v2765 = vadd.f32 %v2716, %v2764
  %v2766 = vpop.f32.mrf.mxu0
  %v2767 = vadd.f32 %v2718, %v2766
  %2768 = vmatmul.bf16.gmra.mxu0 %v1013
  %v2769 = vpop.f32.mrf.mxu0
  %v2770 = vadd.f32 %v2721, %v2769
  %v2771 = vpop.f32.mrf.mxu0
  %v2772 = vadd.f32 %v2723, %v2771
  %2773 = vmatmul.bf16.gmra.mxu0 %v1029
  %v2774 = vpop.f32.mrf.mxu0
  %v2775 = vadd.f32 %v2726, %v2774
  %v2776 = vpop.f32.mrf.mxu0
  %v2777 = vadd.f32 %v2728, %v2776
  %2778 = vmatmul.bf16.gmra.mxu0 %v1045
  %v2779 = vpop.f32.mrf.mxu0
  %v2780 = vadd.f32 %v2731, %v2779
  %v2781 = vpop.f32.mrf.mxu0
  %v2782 = vadd.f32 %v2733, %v2781
  %2783 = vmatmul.bf16.gmra.mxu0 %v1061
  %v2784 = vpop.f32.mrf.mxu0
  %v2785 = vadd.f32 %v2736, %v2784
  %v2786 = vpop.f32.mrf.mxu0
  %v2787 = vadd.f32 %v2738, %v2786
  %2788 = vmatmul.bf16.gmra.mxu0 %v1077
  %v2789 = vpop.f32.mrf.mxu0
  %v2790 = vadd.f32 %v2741, %v2789
  %v2791 = vpop.f32.mrf.mxu0
  %v2792 = vadd.f32 %v2743, %v2791
  %2793 = vdwg.mxu0
  %2794 = vmatpush.bf16.msra.mxu0 %v1971
  %2795 = vmatpush.bf16.msra.mxu0 %v1970
  %2796 = vmatpush.bf16.msra.mxu0 %v1969
  %2797 = vmatpush.bf16.msra.mxu0 %v1968
  %2798 = vmatpush.bf16.msra.mxu0 %v1967
  %2799 = vmatpush.bf16.msra.mxu0 %v1966
  %2800 = vmatpush.bf16.msra.mxu0 %v1965
  %2801 = vmatpush.bf16.msra.mxu0 %v1964
  %2802 = vmatmul.bf16.gmra.mxu0 %v966
  %v2803 = vpop.f32.mrf.mxu0
  %v2804 = vadd.f32 %v2755, %v2803
  %v2805 = vpop.f32.mrf.mxu0
  %v2806 = vadd.f32 %v2757, %v2805
  %2807 = vmatmul.bf16.gmra.mxu0 %v982
  %v2808 = vpop.f32.mrf.mxu0
  %v2809 = vadd.f32 %v2760, %v2808
  %v2810 = vpop.f32.mrf.mxu0
  %v2811 = vadd.f32 %v2762, %v2810
  %2812 = vmatmul.bf16.gmra.mxu0 %v998
  %v2813 = vpop.f32.mrf.mxu0
  %v2814 = vadd.f32 %v2765, %v2813
  %v2815 = vpop.f32.mrf.mxu0
  %v2816 = vadd.f32 %v2767, %v2815
  %2817 = vmatmul.bf16.gmra.mxu0 %v1014
  %v2818 = vpop.f32.mrf.mxu0
  %v2819 = vadd.f32 %v2770, %v2818
  %v2820 = vpop.f32.mrf.mxu0
  %v2821 = vadd.f32 %v2772, %v2820
  %2822 = vmatmul.bf16.gmra.mxu0 %v1030
  %v2823 = vpop.f32.mrf.mxu0
  %v2824 = vadd.f32 %v2775, %v2823
  %v2825 = vpop.f32.mrf.mxu0
  %v2826 = vadd.f32 %v2777, %v2825
  %2827 = vmatmul.bf16.gmra.mxu0 %v1046
  %v2828 = vpop.f32.mrf.mxu0
  %v2829 = vadd.f32 %v2780, %v2828
  %v2830 = vpop.f32.mrf.mxu0
  %v2831 = vadd.f32 %v2782, %v2830
  %2832 = vmatmul.bf16.gmra.mxu0 %v1062
  %v2833 = vpop.f32.mrf.mxu0
  %v2834 = vadd.f32 %v2785, %v2833
  %v2835 = vpop.f32.mrf.mxu0
  %v2836 = vadd.f32 %v2787, %v2835
  %2837 = vmatmul.bf16.gmra.mxu0 %v1078
  %v2838 = vpop.f32.mrf.mxu0
  %v2839 = vadd.f32 %v2790, %v2838
  %v2840 = vpop.f32.mrf.mxu0
  %v2841 = vadd.f32 %v2792, %v2840
  %2842 = vdwg.mxu0
  %2843 = vmatpush.bf16.msra.mxu0 %v1979
  %2844 = vmatpush.bf16.msra.mxu0 %v1978
  %2845 = vmatpush.bf16.msra.mxu0 %v1977
  %2846 = vmatpush.bf16.msra.mxu0 %v1976
  %2847 = vmatpush.bf16.msra.mxu0 %v1975
  %2848 = vmatpush.bf16.msra.mxu0 %v1974
  %2849 = vmatpush.bf16.msra.mxu0 %v1973
  %2850 = vmatpush.bf16.msra.mxu0 %v1972
  %2851 = vmatmul.bf16.gmra.mxu0 %v967
  %v2852 = vpop.f32.mrf.mxu0
  %v2853 = vadd.f32 %v2804, %v2852
  %v2854 = vpop.f32.mrf.mxu0
  %v2855 = vadd.f32 %v2806, %v2854
  %2856 = vmatmul.bf16.gmra.mxu0 %v983
  %v2857 = vpop.f32.mrf.mxu0
  %v2858 = vadd.f32 %v2809, %v2857
  %v2859 = vpop.f32.mrf.mxu0
  %v2860 = vadd.f32 %v2811, %v2859
  %2861 = vmatmul.bf16.gmra.mxu0 %v999
  %v2862 = vpop.f32.mrf.mxu0
  %v2863 = vadd.f32 %v2814, %v2862
  %v2864 = vpop.f32.mrf.mxu0
  %v2865 = vadd.f32 %v2816, %v2864
  %2866 = vmatmul.bf16.gmra.mxu0 %v1015
  %v2867 = vpop.f32.mrf.mxu0
  %v2868 = vadd.f32 %v2819, %v2867
  %v2869 = vpop.f32.mrf.mxu0
  %v2870 = vadd.f32 %v2821, %v2869
  %2871 = vmatmul.bf16.gmra.mxu0 %v1031
  %v2872 = vpop.f32.mrf.mxu0
  %v2873 = vadd.f32 %v2824, %v2872
  %v2874 = vpop.f32.mrf.mxu0
  %v2875 = vadd.f32 %v2826, %v2874
  %2876 = vmatmul.bf16.gmra.mxu0 %v1047
  %v2877 = vpop.f32.mrf.mxu0
  %v2878 = vadd.f32 %v2829, %v2877
  %v2879 = vpop.f32.mrf.mxu0
  %v2880 = vadd.f32 %v2831, %v2879
  %2881 = vmatmul.bf16.gmra.mxu0 %v1063
  %v2882 = vpop.f32.mrf.mxu0
  %v2883 = vadd.f32 %v2834, %v2882
  %v2884 = vpop.f32.mrf.mxu0
  %v2885 = vadd.f32 %v2836, %v2884
  %2886 = vmatmul.bf16.gmra.mxu0 %v1079
  %v2887 = vpop.f32.mrf.mxu0
  %v2888 = vadd.f32 %v2839, %v2887
  %v2889 = vpop.f32.mrf.mxu0
  %v2890 = vadd.f32 %v2841, %v2889
  %2891 = vdwg.mxu0
  %v2892 = vmax.f32 %v2853, 0.0
  %v2893 = vmax.f32 %v2855, 0.0
  %v2894 = vmax.f32 %v2858, 0.0
  %v2895 = vmax.f32 %v2860, 0.0
  %v2896 = vmax.f32 %v2863, 0.0
  %v2897 = vmax.f32 %v2865, 0.0
  %v2898 = vmax.f32 %v2868, 0.0
  %v2899 = vmax.f32 %v2870, 0.0
  %v2900 = vmax.f32 %v2873, 0.0
  %v2901 = vmax.f32 %v2875, 0.0
  %v2902 = vmax.f32 %v2878, 0.0
  %v2903 = vmax.f32 %v2880, 0.0
  %v2904 = vmax.f32 %v2883, 0.0
  %v2905 = vmax.f32 %v2885, 0.0
  %v2906 = vmax.f32 %v2888, 0.0
  %v2907 = vmax.f32 %v2890, 0.0
  %v2908 = vld [vmem:[%s4] sm:$0x1]
  %vm2909 = vcmask 523264
  %v2911 = vsel %vm2909, %v2908, 0
  %v2914 = vsel %vm2909, %v2892, 0
  %v2917 = vsel %vm2909, %v2893, 0
  %v2920 = vsel %vm2909, %v2894, 0
  %v2923 = vsel %vm2909, %v2895, 0
  %v2926 = vsel %vm2909, %v2896, 0
  %v2929 = vsel %vm2909, %v2897, 0
  %v2932 = vsel %vm2909, %v2898, 0
  %v2935 = vsel %vm2909, %v2899, 0
  %v2938 = vsel %vm2909, %v2900, 0
  %v2941 = vsel %vm2909, %v2901, 0
  %v2944 = vsel %vm2909, %v2902, 0
  %v2947 = vsel %vm2909, %v2903, 0
  %v2950 = vsel %vm2909, %v2904, 0
  %v2953 = vsel %vm2909, %v2905, 0
  %v2956 = vsel %vm2909, %v2906, 0
  %v2959 = vsel %vm2909, %v2907, 0
  %2961 = vmatpush.xpose.msra.mxu0 %v2959
  %2962 = vmatpush.xpose.msra.mxu0 %v2956
  %2963 = vmatpush.xpose.msra.mxu0 %v2953
  %2964 = vmatpush.xpose.msra.mxu0 %v2950
  %2965 = vmatpush.xpose.msra.mxu0 %v2947
  %2966 = vmatpush.xpose.msra.mxu0 %v2944
  %2967 = vmatpush.xpose.msra.mxu0 %v2941
  %2968 = vmatpush.xpose.msra.mxu0 %v2938
  %2969 = vmatpush.xpose.msra.mxu0 %v2935
  %2970 = vmatpush.xpose.msra.mxu0 %v2932
  %2971 = vmatpush.xpose.msra.mxu0 %v2929
  %2972 = vmatpush.xpose.msra.mxu0 %v2926
  %2973 = vmatpush.xpose.msra.mxu0 %v2923
  %2974 = vmatpush.xpose.msra.mxu0 %v2920
  %2975 = vmatpush.xpose.msra.mxu0 %v2917
  %2976 = vmatpush.xpose.msra.mxu0 %v2914
  %2977 = vmatmul.f32.gmra.mxu0 %v2911
  %v2978 = vpop.f32.mrf.mxu0
  %v2979 = vadd.f32 0.0, %v2978
  %2980 = vdwg.mxu0
  %2981 = vst [vmem:[%s5] sm:$0x1] %v2979
  // Predicated region
  $region22: #{push_net_forward.1} parent=0 // pred_check
    _
  $region23: #{push_net_forward.1} parent=0 // pred_check_branch
    %2983 = sbr.rel (0) target = $region25
  $region24: #{push_net_forward.1} parent=0 // pred_region
    _
  $region25: #{push_net_forward.1} parent=0 // pred_fallthru
    _
  // Predicated region
  $region26: #{push_net_forward.1} parent=0 // pred_check
    _
  $region27: #{push_net_forward.1} parent=0 // pred_check_branch
    %2985 = sbr.rel (0) target = $region29
  $region28: #{push_net_forward.1} parent=0 // pred_region
    _
  $region29: #{push_net_forward.1} parent=0 // pred_fallthru
    _

</llo_original>
